<compile_context>
chip_gen: v7x
topology: tpu7x:2x2x1
jax: 0.10.0
libtpu: 0.0.40
codegen_flags: <defaults>
</compile_context>

<pallas_src>
import functools

import jax
import jax.numpy as jnp
from jax.experimental import pallas as pl
from jax.experimental.pallas import tpu as pltpu


_VMEM_LIMIT = 32 * 1024 * 1024  # explicit scoped-VMEM budget (safe on v5e/v6e/v7x)


# ----------------------------------------------------------------------------
# Pallas kernel 1: Y = relu?( X @ W + b ), tiled over rows of X.
#   X, W arrive in bf16; dot accumulates in f32; bias/ReLU in f32.
# ----------------------------------------------------------------------------
def _matmul_bias_kernel(x_ref, w_ref, b_ref, o_ref, *, apply_relu):
    y = jnp.dot(x_ref[...], w_ref[...], preferred_element_type=jnp.float32)
    y = y + b_ref[...]                       # b_ref is (1, N) f32
    if apply_relu:
        y = jnp.maximum(y, 0.0)
    o_ref[...] = y.astype(o_ref.dtype)


def pallas_matmul_bias(x, w, b, *, apply_relu, out_dtype, tm_max=512):
    """x: (M, K) bf16, w: (K, N) bf16, b: (1, N) f32 -> (M, N) out_dtype."""
    M, K = x.shape
    Kw, N = w.shape
    assert K == Kw
    tm = M if M <= tm_max else tm_max        # full-extent block for small M
    grid = (pl.cdiv(M, tm),)
    kern = functools.partial(_matmul_bias_kernel, apply_relu=apply_relu)
    return pl.pallas_call(
        kern,
        out_shape=jax.ShapeDtypeStruct((M, N), out_dtype),
        grid=grid,
        in_specs=[
            pl.BlockSpec((tm, K), lambda i: (i, 0)),   # tiled over M, pipelined
            pl.BlockSpec((K, N), lambda i: (0, 0)),    # weight resident
            pl.BlockSpec((1, N), lambda i: (0, 0)),    # bias resident
        ],
        out_specs=pl.BlockSpec((tm, N), lambda i: (i, 0)),
        compiler_params=pltpu.CompilerParams(
            dimension_semantics=("parallel",),         # megacore-shardable on v7x
            vmem_limit_bytes=_VMEM_LIMIT,
        ),
    )(x, w, b)


# ----------------------------------------------------------------------------
# Pallas kernel 2: fused MLP tail  O = relu(X @ W1 + b1) @ W2 + b2
#   Hidden (tm, 512) activation stays in VMEM, never written to HBM.
# ----------------------------------------------------------------------------
def _mlp_tail_kernel(x_ref, w1_ref, b1_ref, w2_ref, b2_ref, o_ref):
    h = jnp.dot(x_ref[...], w1_ref[...], preferred_element_type=jnp.float32)
    h = jnp.maximum(h + b1_ref[...], 0.0)
    y = jnp.dot(h.astype(w2_ref.dtype), w2_ref[...],
                preferred_element_type=jnp.float32)
    o_ref[...] = (y + b2_ref[...]).astype(o_ref.dtype)


def pallas_mlp_tail(x, w1, b1, w2, b2, *, tm_max=512):
    """x: (M, K) bf16; w1: (K, H) bf16; w2: (H, N) bf16; biases f32 (1, ·)."""
    M, K = x.shape
    Kw, H = w1.shape
    Hw, N = w2.shape
    assert K == Kw and H == Hw
    tm = M if M <= tm_max else tm_max
    grid = (pl.cdiv(M, tm),)
    return pl.pallas_call(
        _mlp_tail_kernel,
        out_shape=jax.ShapeDtypeStruct((M, N), jnp.float32),
        grid=grid,
        in_specs=[
            pl.BlockSpec((tm, K), lambda i: (i, 0)),
            pl.BlockSpec((K, H), lambda i: (0, 0)),
            pl.BlockSpec((1, H), lambda i: (0, 0)),
            pl.BlockSpec((H, N), lambda i: (0, 0)),
            pl.BlockSpec((1, N), lambda i: (0, 0)),
        ],
        out_specs=pl.BlockSpec((tm, N), lambda i: (i, 0)),
        compiler_params=pltpu.CompilerParams(
            dimension_semantics=("parallel",),
            vmem_limit_bytes=_VMEM_LIMIT,
        ),
    )(x, w1, b1, w2, b2)


# ----------------------------------------------------------------------------
# im2col glue (plain JAX, NHWC, static slicing, no major<->minor transposes).
# Patch order is (kh, kw, Cin) — weights are pre-flattened to match.
# ----------------------------------------------------------------------------
def im2col_nhwc(x, kh, kw, stride):
    """x: (B, H, W, C) -> (B*Ho*Wo, kh*kw*C)."""
    B, H, W, C = x.shape
    Ho = (H - kh) // stride + 1
    Wo = (W - kw) // stride + 1
    patches = []
    for i in range(kh):
        for j in range(kw):
            patches.append(
                x[:, i:i + stride * Ho:stride, j:j + stride * Wo:stride, :]
            )
    p = jnp.stack(patches, axis=3)                       # (B, Ho, Wo, kh*kw, C)
    p = p.reshape(B * Ho * Wo, kh * kw * C)              # minor-dim merge only
    return p, Ho, Wo


def conv2d_nhwc(x, w2d, b, kh, kw, stride, *, apply_relu=True,
                out_dtype=jnp.bfloat16):
    """x: (B, H, W, Cin) bf16; w2d: (kh*kw*Cin, Cout) bf16; b: (1, Cout) f32."""
    B = x.shape[0]
    Cout = w2d.shape[1]
    cols, Ho, Wo = im2col_nhwc(x, kh, kw, stride)
    y = pallas_matmul_bias(cols, w2d, b, apply_relu=apply_relu,
                           out_dtype=out_dtype)
    return y.reshape(B, Ho, Wo, Cout)                    # stays NHWC


# ----------------------------------------------------------------------------
# Parameters: raw PyTorch-layout params -> kernel (matmul) layout, done once.
# ----------------------------------------------------------------------------
def conv_out(x, ks, s):
    assert (x - ks) % s == 0
    return (x - ks) // s + 1


def init_raw_params(key, frame_stack, input_dim, num_actions):
    """Random params in PyTorch layouts (Cout,Cin,kh,kw) / (out,in)."""
    h1 = conv_out(input_dim, 8, 4)
    h2 = conv_out(h1, 4, 2)
    h3 = conv_out(h2, 3, 1)
    flat = h3 * h3 * 64

    ks = jax.random.split(key, 10)

    def u(k, shape, fan_in):
        bound = 1.0 / jnp.sqrt(fan_in)
        return jax.random.uniform(k, shape, jnp.float32, -bound, bound)

    return {
        "conv1_w": u(ks[0], (32, frame_stack, 8, 8), frame_stack * 64),
        "conv1_b": u(ks[1], (32,), frame_stack * 64),
        "conv2_w": u(ks[2], (64, 32, 4, 4), 32 * 16),
        "conv2_b": u(ks[3], (64,), 32 * 16),
        "conv3_w": u(ks[4], (64, 64, 3, 3), 64 * 9),
        "conv3_b": u(ks[5], (64,), 64 * 9),
        "lin1_w": u(ks[6], (512, flat), flat),           # torch (out, in)
        "lin1_b": u(ks[7], (512,), flat),
        "lin2_w": u(ks[8], (num_actions, 512), 512),
        "lin2_b": u(ks[9], (num_actions,), 512),
    }, h3


def prepare_params(raw, h3):
    """One-time conversion to kernel layout (outside jit).

    * conv weights: (Cout,Cin,kh,kw) -> (kh*kw*Cin, Cout), bf16; conv1 /255 folded.
    * lin1 rows permuted from NCHW-flatten order (C,H,W) to NHWC order (H,W,C)
      so the torch .view() semantics are preserved with NHWC activations.
    * biases stored as (1, N) f32.
    """
    def conv_w(w):
        Cout, Cin, kh, kw = w.shape
        return jnp.transpose(w, (2, 3, 1, 0)).reshape(kh * kw * Cin, Cout)

    l1 = raw["lin1_w"].reshape(512, 64, h3, h3)          # (out, C, H, W)
    l1 = jnp.transpose(l1, (2, 3, 1, 0)).reshape(h3 * h3 * 64, 512)

    return {
        "conv1_w": (conv_w(raw["conv1_w"]) / 255.0).astype(jnp.bfloat16),
        "conv1_b": raw["conv1_b"].reshape(1, -1).astype(jnp.float32),
        "conv2_w": conv_w(raw["conv2_w"]).astype(jnp.bfloat16),
        "conv2_b": raw["conv2_b"].reshape(1, -1).astype(jnp.float32),
        "conv3_w": conv_w(raw["conv3_w"]).astype(jnp.bfloat16),
        "conv3_b": raw["conv3_b"].reshape(1, -1).astype(jnp.float32),
        "lin1_w": l1.astype(jnp.bfloat16),
        "lin1_b": raw["lin1_b"].reshape(1, -1).astype(jnp.float32),
        "lin2_w": raw["lin2_w"].T.astype(jnp.bfloat16),  # (512, A)
        "lin2_b": raw["lin2_b"].reshape(1, -1).astype(jnp.float32),
    }


# ----------------------------------------------------------------------------
# DQNConv forward (Pallas). Input is NCHW uint8-valued floats, like PyTorch.
# ----------------------------------------------------------------------------
@jax.jit
def dqn_conv_forward(params, x):
    # Single entry transpose to NHWC + bf16 cast (0..255 is exact in bf16;
    # the /255 scale lives in conv1_w).
    x = jnp.transpose(x, (0, 2, 3, 1)).astype(jnp.bfloat16)
    x = conv2d_nhwc(x, params["conv1_w"], params["conv1_b"], 8, 8, 4)
    x = conv2d_nhwc(x, params["conv2_w"], params["conv2_b"], 4, 4, 2)
    x = conv2d_nhwc(x, params["conv3_w"], params["conv3_b"], 3, 3, 1)
    B = x.shape[0]
    x = x.reshape(B, -1)                                 # NHWC flatten (lin1_w rows permuted to match)
    return pallas_mlp_tail(x, params["lin1_w"], params["lin1_b"],
                           params["lin2_w"], params["lin2_b"])


# ----------------------------------------------------------------------------
# Pure-JAX reference (f32, NCHW, torch-layout weights) for a correctness check.
# ----------------------------------------------------------------------------
def reference_forward(raw, x):
    y = x / 255.0

    def conv(y, w, b, stride):
        out = jax.lax.conv_general_dilated(
            y, w, window_strides=(stride, stride), padding="VALID",
            dimension_numbers=("NCHW", "OIHW", "NCHW"))
        return jax.nn.relu(out + b[None, :, None, None])

    y = conv(y, raw["conv1_w"], raw["conv1_b"], 4)
    y = conv(y, raw["conv2_w"], raw["conv2_b"], 2)
    y = conv(y, raw["conv3_w"], raw["conv3_b"], 1)
    y = y.reshape(y.shape[0], -1)                        # NCHW flatten (torch .view)
    y = jax.nn.relu(y @ raw["lin1_w"].T + raw["lin1_b"])
    return y @ raw["lin2_w"].T + raw["lin2_b"]


if __name__ == "__main__":
    # Small but valid geometry: input_dim=52 -> conv sizes 12 -> 5 -> 3.
    B, FRAME_STACK, INPUT_DIM, NUM_ACTIONS = 2, 4, 52, 6

    key = jax.random.PRNGKey(0)
    kp, kx = jax.random.split(key)
    raw, h3 = init_raw_params(kp, FRAME_STACK, INPUT_DIM, NUM_ACTIONS)
    params = prepare_params(raw, h3)

    # Simulated uint8 frames (as floats), like Atari observations.
    x = jnp.floor(
        jax.random.uniform(kx, (B, FRAME_STACK, INPUT_DIM, INPUT_DIM),
                           jnp.float32, 0.0, 256.0)
    )

    out = dqn_conv_forward(params, x)
    jax.block_until_ready(out)
    assert out.shape == (B, NUM_ACTIONS), out.shape

    # Numerical check vs. f32 reference (bf16 MXU path => loose tolerance).
    ref = reference_forward(raw, x)
    assert jnp.allclose(out, ref, rtol=0.05, atol=0.1), (
        float(jnp.max(jnp.abs(out - ref))))

    print("KERNEL_OK")
</pallas_src>

<mosaic_0001>
module attributes {stable_mosaic.version = 11 : i64} {
  func.func @_matmul_bias_kernel(%arg0: i32, %arg1: memref<288x256xbf16, #tpu.memory_space<vmem>>, %arg2: memref<256x32xbf16, #tpu.memory_space<vmem>>, %arg3: memref<1x32xf32, #tpu.memory_space<vmem>>, %arg4: memref<288x32xbf16, #tpu.memory_space<vmem>>) attributes {dimension_semantics = [#tpu.dimension_semantics<parallel>], iteration_bounds = array<i64: 1>, scalar_prefetch = 0 : i64, scratch_operands = 0 : i64, tpu.core_type = #tpu.core_type<tc>, window_params = [{transform_indices = @transform_0, window_bounds = array<i64: 288, 256>}, {pipeline_mode = #tpu.pipeline_mode<synchronous>, transform_indices = @transform_1, window_bounds = array<i64: 256, 32>}, {pipeline_mode = #tpu.pipeline_mode<synchronous>, transform_indices = @transform_2, window_bounds = array<i64: 1, 32>}, {transform_indices = @transform_3, window_bounds = array<i64: 288, 32>}]} {
    %c0 = arith.constant 0 : index
    %c0_0 = arith.constant 0 : index
    %0 = vector.load %arg1[%c0, %c0_0] : memref<288x256xbf16, #tpu.memory_space<vmem>>, vector<288x256xbf16>
    %c0_1 = arith.constant 0 : index
    %c0_2 = arith.constant 0 : index
    %1 = vector.load %arg2[%c0_1, %c0_2] : memref<256x32xbf16, #tpu.memory_space<vmem>>, vector<256x32xbf16>
    %cst = arith.constant dense<0.000000e+00> : vector<288x32xf32>
    %2 = tpu.matmul %0, %1, %cst {dimension_numbers = #tpu.dot_dimension_numbers<[1], [0], [0], [1], [0, 0, 1, 1], [], []>} : vector<288x256xbf16>, vector<256x32xbf16>, vector<288x32xf32> -> vector<288x32xf32>
    %c0_3 = arith.constant 0 : index
    %c0_4 = arith.constant 0 : index
    %3 = vector.load %arg3[%c0_3, %c0_4] : memref<1x32xf32, #tpu.memory_space<vmem>>, vector<1x32xf32>
    %4 = vector.broadcast %3 : vector<1x32xf32> to vector<288x32xf32>
    %5 = arith.addf %2, %4 : vector<288x32xf32>
    %cst_5 = arith.constant 0.000000e+00 : f32
    %6 = vector.broadcast %cst_5 : f32 to vector<288x32xf32>
    %7 = arith.maximumf %5, %6 : vector<288x32xf32>
    %8 = arith.truncf %7 : vector<288x32xf32> to vector<288x32xbf16>
    %c0_6 = arith.constant 0 : index
    %c0_7 = arith.constant 0 : index
    %9 = vector.load %arg4[%c0_6, %c0_7] : memref<288x32xbf16, #tpu.memory_space<vmem>>, vector<288x32xbf16>
    tpu.vector_store %arg4[%c0_6, %c0_7], %8 {strides = array<i32>} : memref<288x32xbf16, #tpu.memory_space<vmem>>, vector<288x32xbf16>,
    return
  }
  func.func @transform_0(%arg0: i32) -> (i32, i32) {
    %c0_i32 = arith.constant 0 : i32
    %c0_i32_0 = arith.constant 0 : i32
    return %arg0, %c0_i32 : i32, i32
  }
  func.func @transform_1(%arg0: i32) -> (i32, i32) {
    %c0_i32 = arith.constant 0 : i32
    %c0_i32_0 = arith.constant 0 : i32
    %c0_i32_1 = arith.constant 0 : i32
    return %c0_i32, %c0_i32_0 : i32, i32
  }
  func.func @transform_2(%arg0: i32) -> (i32, i32) {
    %c0_i32 = arith.constant 0 : i32
    %c0_i32_0 = arith.constant 0 : i32
    %c0_i32_1 = arith.constant 0 : i32
    return %c0_i32, %c0_i32_0 : i32, i32
  }
  func.func @transform_3(%arg0: i32) -> (i32, i32) {
    %c0_i32 = arith.constant 0 : i32
    %c0_i32_0 = arith.constant 0 : i32
    return %arg0, %c0_i32 : i32, i32
  }
}

module attributes {stable_mosaic.version = 11 : i64} {
  func.func @_matmul_bias_kernel(%arg0: i32, %arg1: memref<50x512xbf16, #tpu.memory_space<vmem>>, %arg2: memref<512x64xbf16, #tpu.memory_space<vmem>>, %arg3: memref<1x64xf32, #tpu.memory_space<vmem>>, %arg4: memref<50x64xbf16, #tpu.memory_space<vmem>>) attributes {dimension_semantics = [#tpu.dimension_semantics<parallel>], iteration_bounds = array<i64: 1>, scalar_prefetch = 0 : i64, scratch_operands = 0 : i64, tpu.core_type = #tpu.core_type<tc>, window_params = [{transform_indices = @transform_0, window_bounds = array<i64: 50, 512>}, {pipeline_mode = #tpu.pipeline_mode<synchronous>, transform_indices = @transform_1, window_bounds = array<i64: 512, 64>}, {pipeline_mode = #tpu.pipeline_mode<synchronous>, transform_indices = @transform_2, window_bounds = array<i64: 1, 64>}, {transform_indices = @transform_3, window_bounds = array<i64: 50, 64>}]} {
    %c0 = arith.constant 0 : index
    %c0_0 = arith.constant 0 : index
    %0 = vector.load %arg1[%c0, %c0_0] : memref<50x512xbf16, #tpu.memory_space<vmem>>, vector<50x512xbf16>
    %c0_1 = arith.constant 0 : index
    %c0_2 = arith.constant 0 : index
    %1 = vector.load %arg2[%c0_1, %c0_2] : memref<512x64xbf16, #tpu.memory_space<vmem>>, vector<512x64xbf16>
    %cst = arith.constant dense<0.000000e+00> : vector<50x64xf32>
    %2 = tpu.matmul %0, %1, %cst {dimension_numbers = #tpu.dot_dimension_numbers<[1], [0], [0], [1], [0, 0, 1, 1], [], []>} : vector<50x512xbf16>, vector<512x64xbf16>, vector<50x64xf32> -> vector<50x64xf32>
    %c0_3 = arith.constant 0 : index
    %c0_4 = arith.constant 0 : index
    %3 = vector.load %arg3[%c0_3, %c0_4] : memref<1x64xf32, #tpu.memory_space<vmem>>, vector<1x64xf32>
    %4 = vector.broadcast %3 : vector<1x64xf32> to vector<50x64xf32>
    %5 = arith.addf %2, %4 : vector<50x64xf32>
    %cst_5 = arith.constant 0.000000e+00 : f32
    %6 = vector.broadcast %cst_5 : f32 to vector<50x64xf32>
    %7 = arith.maximumf %5, %6 : vector<50x64xf32>
    %8 = arith.truncf %7 : vector<50x64xf32> to vector<50x64xbf16>
    %c0_6 = arith.constant 0 : index
    %c0_7 = arith.constant 0 : index
    %9 = vector.load %arg4[%c0_6, %c0_7] : memref<50x64xbf16, #tpu.memory_space<vmem>>, vector<50x64xbf16>
    tpu.vector_store %arg4[%c0_6, %c0_7], %8 {strides = array<i32>} : memref<50x64xbf16, #tpu.memory_space<vmem>>, vector<50x64xbf16>,
    return
  }
  func.func @transform_0(%arg0: i32) -> (i32, i32) {
    %c0_i32 = arith.constant 0 : i32
    %c0_i32_0 = arith.constant 0 : i32
    return %arg0, %c0_i32 : i32, i32
  }
  func.func @transform_1(%arg0: i32) -> (i32, i32) {
    %c0_i32 = arith.constant 0 : i32
    %c0_i32_0 = arith.constant 0 : i32
    %c0_i32_1 = arith.constant 0 : i32
    return %c0_i32, %c0_i32_0 : i32, i32
  }
  func.func @transform_2(%arg0: i32) -> (i32, i32) {
    %c0_i32 = arith.constant 0 : i32
    %c0_i32_0 = arith.constant 0 : i32
    %c0_i32_1 = arith.constant 0 : i32
    return %c0_i32, %c0_i32_0 : i32, i32
  }
  func.func @transform_3(%arg0: i32) -> (i32, i32) {
    %c0_i32 = arith.constant 0 : i32
    %c0_i32_0 = arith.constant 0 : i32
    return %arg0, %c0_i32 : i32, i32
  }
}

module attributes {stable_mosaic.version = 11 : i64} {
  func.func @_matmul_bias_kernel(%arg0: i32, %arg1: memref<18x576xbf16, #tpu.memory_space<vmem>>, %arg2: memref<576x64xbf16, #tpu.memory_space<vmem>>, %arg3: memref<1x64xf32, #tpu.memory_space<vmem>>, %arg4: memref<18x64xbf16, #tpu.memory_space<vmem>>) attributes {dimension_semantics = [#tpu.dimension_semantics<parallel>], iteration_bounds = array<i64: 1>, scalar_prefetch = 0 : i64, scratch_operands = 0 : i64, tpu.core_type = #tpu.core_type<tc>, window_params = [{transform_indices = @transform_0, window_bounds = array<i64: 18, 576>}, {pipeline_mode = #tpu.pipeline_mode<synchronous>, transform_indices = @transform_1, window_bounds = array<i64: 576, 64>}, {pipeline_mode = #tpu.pipeline_mode<synchronous>, transform_indices = @transform_2, window_bounds = array<i64: 1, 64>}, {transform_indices = @transform_3, window_bounds = array<i64: 18, 64>}]} {
    %c0 = arith.constant 0 : index
    %c0_0 = arith.constant 0 : index
    %0 = vector.load %arg1[%c0, %c0_0] : memref<18x576xbf16, #tpu.memory_space<vmem>>, vector<18x576xbf16>
    %c0_1 = arith.constant 0 : index
    %c0_2 = arith.constant 0 : index
    %1 = vector.load %arg2[%c0_1, %c0_2] : memref<576x64xbf16, #tpu.memory_space<vmem>>, vector<576x64xbf16>
    %cst = arith.constant dense<0.000000e+00> : vector<18x64xf32>
    %2 = tpu.matmul %0, %1, %cst {dimension_numbers = #tpu.dot_dimension_numbers<[1], [0], [0], [1], [0, 0, 1, 1], [], []>} : vector<18x576xbf16>, vector<576x64xbf16>, vector<18x64xf32> -> vector<18x64xf32>
    %c0_3 = arith.constant 0 : index
    %c0_4 = arith.constant 0 : index
    %3 = vector.load %arg3[%c0_3, %c0_4] : memref<1x64xf32, #tpu.memory_space<vmem>>, vector<1x64xf32>
    %4 = vector.broadcast %3 : vector<1x64xf32> to vector<18x64xf32>
    %5 = arith.addf %2, %4 : vector<18x64xf32>
    %cst_5 = arith.constant 0.000000e+00 : f32
    %6 = vector.broadcast %cst_5 : f32 to vector<18x64xf32>
    %7 = arith.maximumf %5, %6 : vector<18x64xf32>
    %8 = arith.truncf %7 : vector<18x64xf32> to vector<18x64xbf16>
    %c0_6 = arith.constant 0 : index
    %c0_7 = arith.constant 0 : index
    %9 = vector.load %arg4[%c0_6, %c0_7] : memref<18x64xbf16, #tpu.memory_space<vmem>>, vector<18x64xbf16>
    tpu.vector_store %arg4[%c0_6, %c0_7], %8 {strides = array<i32>} : memref<18x64xbf16, #tpu.memory_space<vmem>>, vector<18x64xbf16>,
    return
  }
  func.func @transform_0(%arg0: i32) -> (i32, i32) {
    %c0_i32 = arith.constant 0 : i32
    %c0_i32_0 = arith.constant 0 : i32
    return %arg0, %c0_i32 : i32, i32
  }
  func.func @transform_1(%arg0: i32) -> (i32, i32) {
    %c0_i32 = arith.constant 0 : i32
    %c0_i32_0 = arith.constant 0 : i32
    %c0_i32_1 = arith.constant 0 : i32
    return %c0_i32, %c0_i32_0 : i32, i32
  }
  func.func @transform_2(%arg0: i32) -> (i32, i32) {
    %c0_i32 = arith.constant 0 : i32
    %c0_i32_0 = arith.constant 0 : i32
    %c0_i32_1 = arith.constant 0 : i32
    return %c0_i32, %c0_i32_0 : i32, i32
  }
  func.func @transform_3(%arg0: i32) -> (i32, i32) {
    %c0_i32 = arith.constant 0 : i32
    %c0_i32_0 = arith.constant 0 : i32
    return %arg0, %c0_i32 : i32, i32
  }
}

module attributes {stable_mosaic.version = 11 : i64} {
  func.func @_mlp_tail_kernel(%arg0: i32, %arg1: memref<2x576xbf16, #tpu.memory_space<vmem>>, %arg2: memref<576x512xbf16, #tpu.memory_space<vmem>>, %arg3: memref<1x512xf32, #tpu.memory_space<vmem>>, %arg4: memref<512x6xbf16, #tpu.memory_space<vmem>>, %arg5: memref<1x6xf32, #tpu.memory_space<vmem>>, %arg6: memref<2x6xf32, #tpu.memory_space<vmem>>) attributes {dimension_semantics = [#tpu.dimension_semantics<parallel>], iteration_bounds = array<i64: 1>, scalar_prefetch = 0 : i64, scratch_operands = 0 : i64, tpu.core_type = #tpu.core_type<tc>, window_params = [{transform_indices = @transform_0, window_bounds = array<i64: 2, 576>}, {pipeline_mode = #tpu.pipeline_mode<synchronous>, transform_indices = @transform_1, window_bounds = array<i64: 576, 512>}, {pipeline_mode = #tpu.pipeline_mode<synchronous>, transform_indices = @transform_2, window_bounds = array<i64: 1, 512>}, {pipeline_mode = #tpu.pipeline_mode<synchronous>, transform_indices = @transform_3, window_bounds = array<i64: 512, 6>}, {pipeline_mode = #tpu.pipeline_mode<synchronous>, transform_indices = @transform_4, window_bounds = array<i64: 1, 6>}, {transform_indices = @transform_5, window_bounds = array<i64: 2, 6>}]} {
    %c0 = arith.constant 0 : index
    %c0_0 = arith.constant 0 : index
    %0 = vector.load %arg1[%c0, %c0_0] : memref<2x576xbf16, #tpu.memory_space<vmem>>, vector<2x576xbf16>
    %c0_1 = arith.constant 0 : index
    %c0_2 = arith.constant 0 : index
    %1 = vector.load %arg2[%c0_1, %c0_2] : memref<576x512xbf16, #tpu.memory_space<vmem>>, vector<576x512xbf16>
    %cst = arith.constant dense<0.000000e+00> : vector<2x512xf32>
    %2 = tpu.matmul %0, %1, %cst {dimension_numbers = #tpu.dot_dimension_numbers<[1], [0], [0], [1], [0, 0, 1, 1], [], []>} : vector<2x576xbf16>, vector<576x512xbf16>, vector<2x512xf32> -> vector<2x512xf32>
    %c0_3 = arith.constant 0 : index
    %c0_4 = arith.constant 0 : index
    %3 = vector.load %arg3[%c0_3, %c0_4] : memref<1x512xf32, #tpu.memory_space<vmem>>, vector<1x512xf32>
    %4 = vector.broadcast %3 : vector<1x512xf32> to vector<2x512xf32>
    %5 = arith.addf %2, %4 : vector<2x512xf32>
    %cst_5 = arith.constant 0.000000e+00 : f32
    %6 = vector.broadcast %cst_5 : f32 to vector<2x512xf32>
    %7 = arith.maximumf %5, %6 : vector<2x512xf32>
    %8 = arith.truncf %7 : vector<2x512xf32> to vector<2x512xbf16>
    %c0_6 = arith.constant 0 : index
    %c0_7 = arith.constant 0 : index
    %9 = vector.load %arg4[%c0_6, %c0_7] : memref<512x6xbf16, #tpu.memory_space<vmem>>, vector<512x6xbf16>
    %cst_8 = arith.constant dense<0.000000e+00> : vector<2x6xf32>
    %10 = tpu.matmul %8, %9, %cst_8 {dimension_numbers = #tpu.dot_dimension_numbers<[1], [0], [0], [1], [0, 0, 1, 1], [], []>} : vector<2x512xbf16>, vector<512x6xbf16>, vector<2x6xf32> -> vector<2x6xf32>
    %c0_9 = arith.constant 0 : index
    %c0_10 = arith.constant 0 : index
    %11 = vector.load %arg5[%c0_9, %c0_10] : memref<1x6xf32, #tpu.memory_space<vmem>>, vector<1x6xf32>
    %12 = vector.broadcast %11 : vector<1x6xf32> to vector<2x6xf32>
    %13 = arith.addf %10, %12 : vector<2x6xf32>
    %c0_11 = arith.constant 0 : index
    %c0_12 = arith.constant 0 : index
    %14 = vector.load %arg6[%c0_11, %c0_12] : memref<2x6xf32, #tpu.memory_space<vmem>>, vector<2x6xf32>
    tpu.vector_store %arg6[%c0_11, %c0_12], %13 {strides = array<i32>} : memref<2x6xf32, #tpu.memory_space<vmem>>, vector<2x6xf32>,
    return
  }
  func.func @transform_0(%arg0: i32) -> (i32, i32) {
    %c0_i32 = arith.constant 0 : i32
    %c0_i32_0 = arith.constant 0 : i32
    return %arg0, %c0_i32 : i32, i32
  }
  func.func @transform_1(%arg0: i32) -> (i32, i32) {
    %c0_i32 = arith.constant 0 : i32
    %c0_i32_0 = arith.constant 0 : i32
    %c0_i32_1 = arith.constant 0 : i32
    return %c0_i32, %c0_i32_0 : i32, i32
  }
  func.func @transform_2(%arg0: i32) -> (i32, i32) {
    %c0_i32 = arith.constant 0 : i32
    %c0_i32_0 = arith.constant 0 : i32
    %c0_i32_1 = arith.constant 0 : i32
    return %c0_i32, %c0_i32_0 : i32, i32
  }
  func.func @transform_3(%arg0: i32) -> (i32, i32) {
    %c0_i32 = arith.constant 0 : i32
    %c0_i32_0 = arith.constant 0 : i32
    %c0_i32_1 = arith.constant 0 : i32
    return %c0_i32, %c0_i32_0 : i32, i32
  }
  func.func @transform_4(%arg0: i32) -> (i32, i32) {
    %c0_i32 = arith.constant 0 : i32
    %c0_i32_0 = arith.constant 0 : i32
    %c0_i32_1 = arith.constant 0 : i32
    return %c0_i32, %c0_i32_0 : i32, i32
  }
  func.func @transform_5(%arg0: i32) -> (i32, i32) {
    %c0_i32 = arith.constant 0 : i32
    %c0_i32_0 = arith.constant 0 : i32
    return %arg0, %c0_i32 : i32, i32
  }
}

</mosaic_0001>

<llo_original>
// kernel: dqn_conv_forward.4
$region0: #{dqn_conv_forward.4}
  #allocation0 [shape = 'u32[]', space=smem, size = 0x4, offset = 0x4, fixed_abs, tag = 'smem constant byte address 0x4 - core index']
  #allocation1 [shape = 'u32[144,128]{1,0:T(1,128)}', space=vmem, size = 0x12000, scoped, tag = 'internal scratch']
  %s0 = inlined_call_operand.vmem [shape: bf16[288,256], index: 0, kind: input, shape index: {}]
  %s1 = inlined_call_operand.vmem [shape: bf16[256,32], index: 1, kind: input, shape index: {}]
  %s2 = inlined_call_operand.vmem [shape: f32[1,32], index: 2, kind: input, shape index: {}]
  %s3 = inlined_call_operand.vmem [shape: bf16[288,32], index: 3, kind: output, shape index: {}]
  %s4 = sld [smem:[#allocation0]]
  $region22: #{dqn_conv_forward.4} parent=0
    _
  %s6 = ssub.s32 1, %s4
  %s7 = scalar_select 0, %s6, %s4
  // Predicated region
  $region2: #{dqn_conv_forward.4} parent=0 // pred_check
    _
  $region3: #{dqn_conv_forward.4} parent=0 // pred_check_branch
    %9 = sbr.rel (0) target = $region5
  $region4: #{dqn_conv_forward.4} parent=0 // pred_region
    _
  $region5: #{dqn_conv_forward.4} parent=0 // pred_fallthru
    _
  // Predicated region
  $region6: #{dqn_conv_forward.4} parent=0 // pred_check
    _
  $region7: #{dqn_conv_forward.4} parent=0 // pred_check_branch
    %11 = sbr.rel (0) target = $region9
  $region8: #{dqn_conv_forward.4} parent=0 // pred_region
    _
  $region9: #{dqn_conv_forward.4} parent=0 // pred_fallthru
    _
  // Predicated region
  $region10: #{dqn_conv_forward.4} parent=0 // pred_check
    _
  $region11: #{dqn_conv_forward.4} parent=0 // pred_check_branch
    %13 = sbr.rel (0) target = $region13
  $region12: #{dqn_conv_forward.4} parent=0 // pred_region
    _
  $region13: #{dqn_conv_forward.4} parent=0 // pred_fallthru
    _
  %v15 = vld [vmem:[%s0] sm:$0xff]
  %v16 = vld [vmem:[%s0 + $0x8] sm:$0xff]
  %v17 = vld [vmem:[%s0 + $0x10] sm:$0xff]
  %v18 = vld [vmem:[%s0 + $0x18] sm:$0xff]
  %v19 = vld [vmem:[%s0 + $0x20] sm:$0xff]
  %v20 = vld [vmem:[%s0 + $0x28] sm:$0xff]
  %v21 = vld [vmem:[%s0 + $0x30] sm:$0xff]
  %v22 = vld [vmem:[%s0 + $0x38] sm:$0xff]
  %v23 = vld [vmem:[%s0 + $0x40] sm:$0xff]
  %v24 = vld [vmem:[%s0 + $0x48] sm:$0xff]
  %v25 = vld [vmem:[%s0 + $0x50] sm:$0xff]
  %v26 = vld [vmem:[%s0 + $0x58] sm:$0xff]
  %v27 = vld [vmem:[%s0 + $0x60] sm:$0xff]
  %v28 = vld [vmem:[%s0 + $0x68] sm:$0xff]
  %v29 = vld [vmem:[%s0 + $0x70] sm:$0xff]
  %v30 = vld [vmem:[%s0 + $0x78] sm:$0xff]
  %v31 = vld [vmem:[%s0 + $0x80] sm:$0xff]
  %v32 = vld [vmem:[%s0 + $0x88] sm:$0xff]
  %v33 = vld [vmem:[%s0 + $0x90] sm:$0xff]
  %v34 = vld [vmem:[%s0 + $0x98] sm:$0xff]
  %v35 = vld [vmem:[%s0 + $0xa0] sm:$0xff]
  %v36 = vld [vmem:[%s0 + $0xa8] sm:$0xff]
  %v37 = vld [vmem:[%s0 + $0xb0] sm:$0xff]
  %v38 = vld [vmem:[%s0 + $0xb8] sm:$0xff]
  %v39 = vld [vmem:[%s0 + $0xc0] sm:$0xff]
  %v40 = vld [vmem:[%s0 + $0xc8] sm:$0xff]
  %v41 = vld [vmem:[%s0 + $0xd0] sm:$0xff]
  %v42 = vld [vmem:[%s0 + $0xd8] sm:$0xff]
  %v43 = vld [vmem:[%s0 + $0xe0] sm:$0xff]
  %v44 = vld [vmem:[%s0 + $0xe8] sm:$0xff]
  %v45 = vld [vmem:[%s0 + $0xf0] sm:$0xff]
  %v46 = vld [vmem:[%s0 + $0xf8] sm:$0xff]
  %v47 = vld [vmem:[%s0 + $0x100] sm:$0xff]
  %v48 = vld [vmem:[%s0 + $0x108] sm:$0xff]
  %v49 = vld [vmem:[%s0 + $0x110] sm:$0xff]
  %v50 = vld [vmem:[%s0 + $0x118] sm:$0xff]
  %v51 = vld [vmem:[%s1] sm:$0xf]
  %v52 = vld [vmem:[%s1 + $0x4] sm:$0xf]
  %v53 = vld [vmem:[%s1 + $0x8] sm:$0xf]
  %v54 = vld [vmem:[%s1 + $0xc] sm:$0xf]
  %v55 = vld [vmem:[%s1 + $0x10] sm:$0xf]
  %v56 = vld [vmem:[%s1 + $0x14] sm:$0xf]
  %v57 = vld [vmem:[%s1 + $0x18] sm:$0xf]
  %v58 = vld [vmem:[%s1 + $0x1c] sm:$0xf]
  %v59 = vld [vmem:[%s1 + $0x20] sm:$0xf]
  %v60 = vld [vmem:[%s1 + $0x24] sm:$0xf]
  %v61 = vld [vmem:[%s1 + $0x28] sm:$0xf]
  %v62 = vld [vmem:[%s1 + $0x2c] sm:$0xf]
  %v63 = vld [vmem:[%s1 + $0x30] sm:$0xf]
  %v64 = vld [vmem:[%s1 + $0x34] sm:$0xf]
  %v65 = vld [vmem:[%s1 + $0x38] sm:$0xf]
  %v66 = vld [vmem:[%s1 + $0x3c] sm:$0xf]
  %v67 = vld [vmem:[%s1 + $0x40] sm:$0xf]
  %v68 = vld [vmem:[%s1 + $0x44] sm:$0xf]
  %v69 = vld [vmem:[%s1 + $0x48] sm:$0xf]
  %v70 = vld [vmem:[%s1 + $0x4c] sm:$0xf]
  %v71 = vld [vmem:[%s1 + $0x50] sm:$0xf]
  %v72 = vld [vmem:[%s1 + $0x54] sm:$0xf]
  %v73 = vld [vmem:[%s1 + $0x58] sm:$0xf]
  %v74 = vld [vmem:[%s1 + $0x5c] sm:$0xf]
  %v75 = vld [vmem:[%s1 + $0x60] sm:$0xf]
  %v76 = vld [vmem:[%s1 + $0x64] sm:$0xf]
  %v77 = vld [vmem:[%s1 + $0x68] sm:$0xf]
  %v78 = vld [vmem:[%s1 + $0x6c] sm:$0xf]
  %v79 = vld [vmem:[%s1 + $0x70] sm:$0xf]
  %v80 = vld [vmem:[%s1 + $0x74] sm:$0xf]
  %v81 = vld [vmem:[%s1 + $0x78] sm:$0xf]
  %v82 = vld [vmem:[%s1 + $0x7c] sm:$0xf]
  %v83 = vld [vmem:[%s2] sm:$0x1]
  %v85 = vlaneseq
  %v86 = vshrl.u32 %v85, 7
  %v87 = vsub.s32 0, %v86
  %v88 = vrot.slane %v83, %v87
  %v126 = vunpack.c.l.b16 %v15
  %v127 = vunpack.c.h.b16 %v15
  %v128 = vunpack.c.l.b16 %v16
  %v129 = vunpack.c.h.b16 %v16
  %v130 = vunpack.c.l.b16 %v17
  %v131 = vunpack.c.h.b16 %v17
  %v132 = vunpack.c.l.b16 %v18
  %v133 = vunpack.c.h.b16 %v18
  %v134 = vunpack.c.l.b16 %v19
  %v135 = vunpack.c.h.b16 %v19
  %v136 = vunpack.c.l.b16 %v20
  %v137 = vunpack.c.h.b16 %v20
  %v138 = vunpack.c.l.b16 %v21
  %v139 = vunpack.c.h.b16 %v21
  %v140 = vunpack.c.l.b16 %v22
  %v141 = vunpack.c.h.b16 %v22
  %v142 = vunpack.c.l.b16 %v23
  %v143 = vunpack.c.h.b16 %v23
  %v144 = vunpack.c.l.b16 %v24
  %v145 = vunpack.c.h.b16 %v24
  %v146 = vunpack.c.l.b16 %v25
  %v147 = vunpack.c.h.b16 %v25
  %v148 = vunpack.c.l.b16 %v26
  %v149 = vunpack.c.h.b16 %v26
  %v150 = vunpack.c.l.b16 %v27
  %v151 = vunpack.c.h.b16 %v27
  %v152 = vunpack.c.l.b16 %v28
  %v153 = vunpack.c.h.b16 %v28
  %v154 = vunpack.c.l.b16 %v29
  %v155 = vunpack.c.h.b16 %v29
  %v156 = vunpack.c.l.b16 %v30
  %v157 = vunpack.c.h.b16 %v30
  %v158 = vunpack.c.l.b16 %v31
  %v159 = vunpack.c.h.b16 %v31
  %v160 = vunpack.c.l.b16 %v32
  %v161 = vunpack.c.h.b16 %v32
  %v162 = vunpack.c.l.b16 %v33
  %v163 = vunpack.c.h.b16 %v33
  %v164 = vunpack.c.l.b16 %v34
  %v165 = vunpack.c.h.b16 %v34
  %v166 = vunpack.c.l.b16 %v35
  %v167 = vunpack.c.h.b16 %v35
  %v168 = vunpack.c.l.b16 %v36
  %v169 = vunpack.c.h.b16 %v36
  %v170 = vunpack.c.l.b16 %v37
  %v171 = vunpack.c.h.b16 %v37
  %v172 = vunpack.c.l.b16 %v38
  %v173 = vunpack.c.h.b16 %v38
  %v174 = vunpack.c.l.b16 %v39
  %v175 = vunpack.c.h.b16 %v39
  %v176 = vunpack.c.l.b16 %v40
  %v177 = vunpack.c.h.b16 %v40
  %v178 = vunpack.c.l.b16 %v41
  %v179 = vunpack.c.h.b16 %v41
  %v180 = vunpack.c.l.b16 %v42
  %v181 = vunpack.c.h.b16 %v42
  %v182 = vunpack.c.l.b16 %v43
  %v183 = vunpack.c.h.b16 %v43
  %v184 = vunpack.c.l.b16 %v44
  %v185 = vunpack.c.h.b16 %v44
  %v186 = vunpack.c.l.b16 %v45
  %v187 = vunpack.c.h.b16 %v45
  %v188 = vunpack.c.l.b16 %v46
  %v189 = vunpack.c.h.b16 %v46
  %v190 = vunpack.c.l.b16 %v47
  %v191 = vunpack.c.h.b16 %v47
  %v192 = vunpack.c.l.b16 %v48
  %v193 = vunpack.c.h.b16 %v48
  %v194 = vunpack.c.l.b16 %v49
  %v195 = vunpack.c.h.b16 %v49
  %v196 = vunpack.c.l.b16 %v50
  %v197 = vunpack.c.h.b16 %v50
  %v198 = vpack.c.b16 %v128, %v126
  %v199 = vpack.c.b16 %v129, %v127
  %v200 = vpack.c.b16 %v132, %v130
  %v201 = vpack.c.b16 %v133, %v131
  %v202 = vpack.c.b16 %v136, %v134
  %v203 = vpack.c.b16 %v137, %v135
  %v204 = vpack.c.b16 %v140, %v138
  %v205 = vpack.c.b16 %v141, %v139
  %v206 = vpack.c.b16 %v144, %v142
  %v207 = vpack.c.b16 %v145, %v143
  %v208 = vpack.c.b16 %v148, %v146
  %v209 = vpack.c.b16 %v149, %v147
  %v210 = vpack.c.b16 %v152, %v150
  %v211 = vpack.c.b16 %v153, %v151
  %v212 = vpack.c.b16 %v156, %v154
  %v213 = vpack.c.b16 %v157, %v155
  %v214 = vpack.c.b16 %v160, %v158
  %v215 = vpack.c.b16 %v161, %v159
  %v216 = vpack.c.b16 %v164, %v162
  %v217 = vpack.c.b16 %v165, %v163
  %v218 = vpack.c.b16 %v168, %v166
  %v219 = vpack.c.b16 %v169, %v167
  %v220 = vpack.c.b16 %v172, %v170
  %v221 = vpack.c.b16 %v173, %v171
  %v222 = vpack.c.b16 %v176, %v174
  %v223 = vpack.c.b16 %v177, %v175
  %v224 = vpack.c.b16 %v180, %v178
  %v225 = vpack.c.b16 %v181, %v179
  %v226 = vpack.c.b16 %v184, %v182
  %v227 = vpack.c.b16 %v185, %v183
  %v228 = vpack.c.b16 %v188, %v186
  %v229 = vpack.c.b16 %v189, %v187
  %v230 = vpack.c.b16 %v192, %v190
  %v231 = vpack.c.b16 %v193, %v191
  %v232 = vpack.c.b16 %v196, %v194
  %v233 = vpack.c.b16 %v197, %v195
  %v302 = vunpack.c.l.b16 %v51
  %v303 = vunpack.c.l.b16 %v52
  %v304 = vunpack.c.l.b16 %v53
  %v305 = vunpack.c.l.b16 %v54
  %v306 = vunpack.c.l.b16 %v55
  %v307 = vunpack.c.l.b16 %v56
  %v308 = vunpack.c.l.b16 %v57
  %v309 = vunpack.c.l.b16 %v58
  %v310 = vunpack.c.l.b16 %v59
  %v311 = vunpack.c.l.b16 %v60
  %v312 = vunpack.c.l.b16 %v61
  %v313 = vunpack.c.l.b16 %v62
  %v314 = vunpack.c.l.b16 %v63
  %v315 = vunpack.c.l.b16 %v64
  %v316 = vunpack.c.l.b16 %v65
  %v317 = vunpack.c.l.b16 %v66
  %v318 = vunpack.c.l.b16 %v67
  %v319 = vunpack.c.l.b16 %v68
  %v320 = vunpack.c.l.b16 %v69
  %v321 = vunpack.c.l.b16 %v70
  %v322 = vunpack.c.l.b16 %v71
  %v323 = vunpack.c.l.b16 %v72
  %v324 = vunpack.c.l.b16 %v73
  %v325 = vunpack.c.l.b16 %v74
  %v326 = vunpack.c.l.b16 %v75
  %v327 = vunpack.c.l.b16 %v76
  %v328 = vunpack.c.l.b16 %v77
  %v329 = vunpack.c.l.b16 %v78
  %v330 = vunpack.c.l.b16 %v79
  %v331 = vunpack.c.l.b16 %v80
  %v332 = vunpack.c.l.b16 %v81
  %v333 = vunpack.c.l.b16 %v82
  %v334 = vpack.c.b16 %v303, %v302
  %v335 = vpack.c.b16 %v305, %v304
  %v336 = vpack.c.b16 %v307, %v306
  %v337 = vpack.c.b16 %v309, %v308
  %v338 = vpack.c.b16 %v311, %v310
  %v339 = vpack.c.b16 %v313, %v312
  %v340 = vpack.c.b16 %v315, %v314
  %v341 = vpack.c.b16 %v317, %v316
  %v342 = vpack.c.b16 %v319, %v318
  %v343 = vpack.c.b16 %v321, %v320
  %v344 = vpack.c.b16 %v323, %v322
  %v345 = vpack.c.b16 %v325, %v324
  %v346 = vpack.c.b16 %v327, %v326
  %v347 = vpack.c.b16 %v329, %v328
  %v348 = vpack.c.b16 %v331, %v330
  %v349 = vpack.c.b16 %v333, %v332
  %366 = vmatprep.subr.bf16.mxu0 0
  %367 = vmatpush1.bf16.msra.mxu0 %v334
  %368 = vmatprep.subr.bf16.mxu0 0
  %369 = vmatpush1.bf16.msra.mxu0 %v335
  %370 = vmatprep.subr.bf16.mxu0 0
  %371 = vmatpush1.bf16.msra.mxu0 %v336
  %372 = vmatprep.subr.bf16.mxu0 0
  %373 = vmatpush1.bf16.msra.mxu0 %v337
  %374 = vmatprep.subr.bf16.mxu0 0
  %375 = vmatpush1.bf16.msra.mxu0 %v338
  %376 = vmatprep.subr.bf16.mxu0 0
  %377 = vmatpush1.bf16.msra.mxu0 %v339
  %378 = vmatprep.subr.bf16.mxu0 0
  %379 = vmatpush1.bf16.msra.mxu0 %v340
  %380 = vmatprep.subr.bf16.mxu0 0
  %381 = vmatpush1.bf16.msra.mxu0 %v341
  %382 = vmatprep.subr.bf16.mxu0 0
  %383 = vmatpush1.bf16.msra.mxu0 %v342
  %384 = vmatprep.subr.bf16.mxu0 0
  %385 = vmatpush1.bf16.msra.mxu0 %v343
  %386 = vmatprep.subr.bf16.mxu0 0
  %387 = vmatpush1.bf16.msra.mxu0 %v344
  %388 = vmatprep.subr.bf16.mxu0 0
  %389 = vmatpush1.bf16.msra.mxu0 %v345
  %390 = vmatprep.subr.bf16.mxu0 0
  %391 = vmatpush1.bf16.msra.mxu0 %v346
  %392 = vmatprep.subr.bf16.mxu0 0
  %393 = vmatpush1.bf16.msra.mxu0 %v347
  %394 = vmatprep.subr.bf16.mxu0 0
  %395 = vmatpush1.bf16.msra.mxu0 %v348
  %396 = vmatprep.subr.bf16.mxu0 0
  %397 = vmatpush1.bf16.msra.mxu0 %v349
  %398 = vmatprep.mubr.bf16.mxu0 %v199
  %399 = vmatmul.mubr.bf16.gmra.mrb[0].mxu0 %v198
  %v400 = vpop.f32.mrb[0].mxu0
  %v401 = vadd.f32 %v88, %v400
  %v402 = vpop.f32.mrb[0].mxu0
  %v403 = vpop.f32.mrb[0].mxu0
  %v404 = vadd.f32 %v88, %v403
  %v405 = vpop.f32.mrb[0].mxu0
  %406 = vmatprep.mubr.bf16.mxu0 %v201
  %407 = vmatmul.mubr.bf16.gmra.mrb[0].mxu0 %v200
  %v408 = vpop.f32.mrb[0].mxu0
  %v409 = vadd.f32 %v88, %v408
  %v410 = vpop.f32.mrb[0].mxu0
  %v411 = vpop.f32.mrb[0].mxu0
  %v412 = vadd.f32 %v88, %v411
  %v413 = vpop.f32.mrb[0].mxu0
  %414 = vmatprep.mubr.bf16.mxu0 %v203
  %415 = vmatmul.mubr.bf16.gmra.mrb[0].mxu0 %v202
  %v416 = vpop.f32.mrb[0].mxu0
  %v417 = vadd.f32 %v88, %v416
  %v418 = vpop.f32.mrb[0].mxu0
  %v419 = vpop.f32.mrb[0].mxu0
  %v420 = vadd.f32 %v88, %v419
  %v421 = vpop.f32.mrb[0].mxu0
  %422 = vmatprep.mubr.bf16.mxu0 %v205
  %423 = vmatmul.mubr.bf16.gmra.mrb[0].mxu0 %v204
  %v424 = vpop.f32.mrb[0].mxu0
  %v425 = vadd.f32 %v88, %v424
  %v426 = vpop.f32.mrb[0].mxu0
  %v427 = vpop.f32.mrb[0].mxu0
  %v428 = vadd.f32 %v88, %v427
  %v429 = vpop.f32.mrb[0].mxu0
  %430 = vmatprep.mubr.bf16.mxu0 %v207
  %431 = vmatmul.mubr.bf16.gmra.mrb[0].mxu0 %v206
  %v432 = vpop.f32.mrb[0].mxu0
  %v433 = vadd.f32 %v88, %v432
  %v434 = vpop.f32.mrb[0].mxu0
  %v435 = vpop.f32.mrb[0].mxu0
  %v436 = vadd.f32 %v88, %v435
  %v437 = vpop.f32.mrb[0].mxu0
  %438 = vmatprep.mubr.bf16.mxu0 %v209
  %439 = vmatmul.mubr.bf16.gmra.mrb[0].mxu0 %v208
  %v440 = vpop.f32.mrb[0].mxu0
  %v441 = vadd.f32 %v88, %v440
  %v442 = vpop.f32.mrb[0].mxu0
  %v443 = vpop.f32.mrb[0].mxu0
  %v444 = vadd.f32 %v88, %v443
  %v445 = vpop.f32.mrb[0].mxu0
  %446 = vmatprep.mubr.bf16.mxu0 %v211
  %447 = vmatmul.mubr.bf16.gmra.mrb[0].mxu0 %v210
  %v448 = vpop.f32.mrb[0].mxu0
  %v449 = vadd.f32 %v88, %v448
  %v450 = vpop.f32.mrb[0].mxu0
  %v451 = vpop.f32.mrb[0].mxu0
  %v452 = vadd.f32 %v88, %v451
  %v453 = vpop.f32.mrb[0].mxu0
  %454 = vmatprep.mubr.bf16.mxu0 %v213
  %455 = vmatmul.mubr.bf16.gmra.mrb[0].mxu0 %v212
  %v456 = vpop.f32.mrb[0].mxu0
  %v457 = vadd.f32 %v88, %v456
  %v458 = vpop.f32.mrb[0].mxu0
  %v459 = vpop.f32.mrb[0].mxu0
  %v460 = vadd.f32 %v88, %v459
  %v461 = vpop.f32.mrb[0].mxu0
  %462 = vmatprep.mubr.bf16.mxu0 %v215
  %463 = vmatmul.mubr.bf16.gmra.mrb[0].mxu0 %v214
  %v464 = vpop.f32.mrb[0].mxu0
  %v465 = vadd.f32 %v88, %v464
  %v466 = vpop.f32.mrb[0].mxu0
  %v467 = vpop.f32.mrb[0].mxu0
  %v468 = vadd.f32 %v88, %v467
  %v469 = vpop.f32.mrb[0].mxu0
  %470 = vmatprep.mubr.bf16.mxu0 %v217
  %471 = vmatmul.mubr.bf16.gmra.mrb[0].mxu0 %v216
  %v472 = vpop.f32.mrb[0].mxu0
  %v473 = vadd.f32 %v88, %v472
  %v474 = vpop.f32.mrb[0].mxu0
  %v475 = vpop.f32.mrb[0].mxu0
  %v476 = vadd.f32 %v88, %v475
  %v477 = vpop.f32.mrb[0].mxu0
  %478 = vmatprep.mubr.bf16.mxu0 %v219
  %479 = vmatmul.mubr.bf16.gmra.mrb[0].mxu0 %v218
  %v480 = vpop.f32.mrb[0].mxu0
  %v481 = vadd.f32 %v88, %v480
  %v482 = vpop.f32.mrb[0].mxu0
  %v483 = vpop.f32.mrb[0].mxu0
  %v484 = vadd.f32 %v88, %v483
  %v485 = vpop.f32.mrb[0].mxu0
  %486 = vmatprep.mubr.bf16.mxu0 %v221
  %487 = vmatmul.mubr.bf16.gmra.mrb[0].mxu0 %v220
  %v488 = vpop.f32.mrb[0].mxu0
  %v489 = vadd.f32 %v88, %v488
  %v490 = vpop.f32.mrb[0].mxu0
  %v491 = vpop.f32.mrb[0].mxu0
  %v492 = vadd.f32 %v88, %v491
  %v493 = vpop.f32.mrb[0].mxu0
  %494 = vmatprep.mubr.bf16.mxu0 %v223
  %495 = vmatmul.mubr.bf16.gmra.mrb[0].mxu0 %v222
  %v496 = vpop.f32.mrb[0].mxu0
  %v497 = vadd.f32 %v88, %v496
  %v498 = vpop.f32.mrb[0].mxu0
  %v499 = vpop.f32.mrb[0].mxu0
  %v500 = vadd.f32 %v88, %v499
  %v501 = vpop.f32.mrb[0].mxu0
  %502 = vmatprep.mubr.bf16.mxu0 %v225
  %503 = vmatmul.mubr.bf16.gmra.mrb[0].mxu0 %v224
  %v504 = vpop.f32.mrb[0].mxu0
  %v505 = vadd.f32 %v88, %v504
  %v506 = vpop.f32.mrb[0].mxu0
  %v507 = vpop.f32.mrb[0].mxu0
  %v508 = vadd.f32 %v88, %v507
  %v509 = vpop.f32.mrb[0].mxu0
  %510 = vmatprep.mubr.bf16.mxu0 %v227
  %511 = vmatmul.mubr.bf16.gmra.mrb[0].mxu0 %v226
  %v512 = vpop.f32.mrb[0].mxu0
  %v513 = vadd.f32 %v88, %v512
  %v514 = vpop.f32.mrb[0].mxu0
  %v515 = vpop.f32.mrb[0].mxu0
  %v516 = vadd.f32 %v88, %v515
  %v517 = vpop.f32.mrb[0].mxu0
  %518 = vmatprep.mubr.bf16.mxu0 %v229
  %519 = vmatmul.mubr.bf16.gmra.mrb[0].mxu0 %v228
  %v520 = vpop.f32.mrb[0].mxu0
  %v521 = vadd.f32 %v88, %v520
  %v522 = vpop.f32.mrb[0].mxu0
  %v523 = vpop.f32.mrb[0].mxu0
  %v524 = vadd.f32 %v88, %v523
  %v525 = vpop.f32.mrb[0].mxu0
  %526 = vmatprep.mubr.bf16.mxu0 %v231
  %527 = vmatmul.mubr.bf16.gmra.mrb[0].mxu0 %v230
  %v528 = vpop.f32.mrb[0].mxu0
  %v529 = vadd.f32 %v88, %v528
  %v530 = vpop.f32.mrb[0].mxu0
  %v531 = vpop.f32.mrb[0].mxu0
  %v532 = vadd.f32 %v88, %v531
  %v533 = vpop.f32.mrb[0].mxu0
  %534 = vmatprep.mubr.bf16.mxu0 %v233
  %535 = vmatmul.mubr.bf16.gmra.mrb[0].mxu0 %v232
  %v536 = vpop.f32.mrb[0].mxu0
  %v537 = vadd.f32 %v88, %v536
  %v538 = vpop.f32.mrb[0].mxu0
  %v539 = vpop.f32.mrb[0].mxu0
  %v540 = vadd.f32 %v88, %v539
  %v541 = vpop.f32.mrb[0].mxu0
  %542 = vdwg.mxu0
  %v543 = vmax.f32 %v401, 0.0
  %v544 = vmax.f32 %v404, 0.0
  %v545 = vmax.f32 %v409, 0.0
  %v546 = vmax.f32 %v412, 0.0
  %v547 = vmax.f32 %v417, 0.0
  %v548 = vmax.f32 %v420, 0.0
  %v549 = vmax.f32 %v425, 0.0
  %v550 = vmax.f32 %v428, 0.0
  %v551 = vmax.f32 %v433, 0.0
  %v552 = vmax.f32 %v436, 0.0
  %v553 = vmax.f32 %v441, 0.0
  %v554 = vmax.f32 %v444, 0.0
  %v555 = vmax.f32 %v449, 0.0
  %v556 = vmax.f32 %v452, 0.0
  %v557 = vmax.f32 %v457, 0.0
  %v558 = vmax.f32 %v460, 0.0
  %v559 = vmax.f32 %v465, 0.0
  %v560 = vmax.f32 %v468, 0.0
  %v561 = vmax.f32 %v473, 0.0
  %v562 = vmax.f32 %v476, 0.0
  %v563 = vmax.f32 %v481, 0.0
  %v564 = vmax.f32 %v484, 0.0
  %v565 = vmax.f32 %v489, 0.0
  %v566 = vmax.f32 %v492, 0.0
  %v567 = vmax.f32 %v497, 0.0
  %v568 = vmax.f32 %v500, 0.0
  %v569 = vmax.f32 %v505, 0.0
  %v570 = vmax.f32 %v508, 0.0
  %v571 = vmax.f32 %v513, 0.0
  %v572 = vmax.f32 %v516, 0.0
  %v573 = vmax.f32 %v521, 0.0
  %v574 = vmax.f32 %v524, 0.0
  %v575 = vmax.f32 %v529, 0.0
  %v576 = vmax.f32 %v532, 0.0
  %v577 = vmax.f32 %v537, 0.0
  %v578 = vmax.f32 %v540, 0.0
  %v579 = vpack.c.bf16 %v544, %v543
  %v580 = vpack.c.bf16 %v546, %v545
  %v581 = vpack.c.bf16 %v548, %v547
  %v582 = vpack.c.bf16 %v550, %v549
  %v583 = vpack.c.bf16 %v552, %v551
  %v584 = vpack.c.bf16 %v554, %v553
  %v585 = vpack.c.bf16 %v556, %v555
  %v586 = vpack.c.bf16 %v558, %v557
  %v587 = vpack.c.bf16 %v560, %v559
  %v588 = vpack.c.bf16 %v562, %v561
  %v589 = vpack.c.bf16 %v564, %v563
  %v590 = vpack.c.bf16 %v566, %v565
  %v591 = vpack.c.bf16 %v568, %v567
  %v592 = vpack.c.bf16 %v570, %v569
  %v593 = vpack.c.bf16 %v572, %v571
  %v594 = vpack.c.bf16 %v574, %v573
  %v595 = vpack.c.bf16 %v576, %v575
  %v596 = vpack.c.bf16 %v578, %v577
  %v615 = vunpack.c.l.b16 %v579
  %v616 = vunpack.c.h.b16 %v579
  %v617 = vunpack.c.l.b16 %v580
  %v618 = vunpack.c.h.b16 %v580
  %v619 = vunpack.c.l.b16 %v581
  %v620 = vunpack.c.h.b16 %v581
  %v621 = vunpack.c.l.b16 %v582
  %v622 = vunpack.c.h.b16 %v582
  %v623 = vunpack.c.l.b16 %v583
  %v624 = vunpack.c.h.b16 %v583
  %v625 = vunpack.c.l.b16 %v584
  %v626 = vunpack.c.h.b16 %v584
  %v627 = vunpack.c.l.b16 %v585
  %v628 = vunpack.c.h.b16 %v585
  %v629 = vunpack.c.l.b16 %v586
  %v630 = vunpack.c.h.b16 %v586
  %v631 = vunpack.c.l.b16 %v587
  %v632 = vunpack.c.h.b16 %v587
  %v633 = vunpack.c.l.b16 %v588
  %v634 = vunpack.c.h.b16 %v588
  %v635 = vunpack.c.l.b16 %v589
  %v636 = vunpack.c.h.b16 %v589
  %v637 = vunpack.c.l.b16 %v590
  %v638 = vunpack.c.h.b16 %v590
  %v639 = vunpack.c.l.b16 %v591
  %v640 = vunpack.c.h.b16 %v591
  %v641 = vunpack.c.l.b16 %v592
  %v642 = vunpack.c.h.b16 %v592
  %v643 = vunpack.c.l.b16 %v593
  %v644 = vunpack.c.h.b16 %v593
  %v645 = vunpack.c.l.b16 %v594
  %v646 = vunpack.c.h.b16 %v594
  %v647 = vunpack.c.l.b16 %v595
  %v648 = vunpack.c.h.b16 %v595
  %v649 = vunpack.c.l.b16 %v596
  %v650 = vunpack.c.h.b16 %v596
  %v651 = vpack.c.b16 %v615, %v615
  %v652 = vpack.c.b16 %v616, %v616
  %v653 = vpack.c.b16 %v617, %v617
  %v654 = vpack.c.b16 %v618, %v618
  %v655 = vpack.c.b16 %v619, %v619
  %v656 = vpack.c.b16 %v620, %v620
  %v657 = vpack.c.b16 %v621, %v621
  %v658 = vpack.c.b16 %v622, %v622
  %v659 = vpack.c.b16 %v623, %v623
  %v660 = vpack.c.b16 %v624, %v624
  %v661 = vpack.c.b16 %v625, %v625
  %v662 = vpack.c.b16 %v626, %v626
  %v663 = vpack.c.b16 %v627, %v627
  %v664 = vpack.c.b16 %v628, %v628
  %v665 = vpack.c.b16 %v629, %v629
  %v666 = vpack.c.b16 %v630, %v630
  %v667 = vpack.c.b16 %v631, %v631
  %v668 = vpack.c.b16 %v632, %v632
  %v669 = vpack.c.b16 %v633, %v633
  %v670 = vpack.c.b16 %v634, %v634
  %v671 = vpack.c.b16 %v635, %v635
  %v672 = vpack.c.b16 %v636, %v636
  %v673 = vpack.c.b16 %v637, %v637
  %v674 = vpack.c.b16 %v638, %v638
  %v675 = vpack.c.b16 %v639, %v639
  %v676 = vpack.c.b16 %v640, %v640
  %v677 = vpack.c.b16 %v641, %v641
  %v678 = vpack.c.b16 %v642, %v642
  %v679 = vpack.c.b16 %v643, %v643
  %v680 = vpack.c.b16 %v644, %v644
  %v681 = vpack.c.b16 %v645, %v645
  %v682 = vpack.c.b16 %v646, %v646
  %v683 = vpack.c.b16 %v647, %v647
  %v684 = vpack.c.b16 %v648, %v648
  %v685 = vpack.c.b16 %v649, %v649
  %v686 = vpack.c.b16 %v650, %v650
  %vm723 = vcmask 257024
  %724 = vst.msk [vmem:[%s3] sm:$0xf] %vm723, %v651
  %725 = vst.msk [vmem:[%s3 + $0x4] sm:$0xf] %vm723, %v652
  %726 = vst.msk [vmem:[%s3 + $0x8] sm:$0xf] %vm723, %v653
  %727 = vst.msk [vmem:[%s3 + $0xc] sm:$0xf] %vm723, %v654
  %728 = vst.msk [vmem:[%s3 + $0x10] sm:$0xf] %vm723, %v655
  %729 = vst.msk [vmem:[%s3 + $0x14] sm:$0xf] %vm723, %v656
  %730 = vst.msk [vmem:[%s3 + $0x18] sm:$0xf] %vm723, %v657
  %731 = vst.msk [vmem:[%s3 + $0x1c] sm:$0xf] %vm723, %v658
  %732 = vst.msk [vmem:[%s3 + $0x20] sm:$0xf] %vm723, %v659
  %733 = vst.msk [vmem:[%s3 + $0x24] sm:$0xf] %vm723, %v660
  %734 = vst.msk [vmem:[%s3 + $0x28] sm:$0xf] %vm723, %v661
  %735 = vst.msk [vmem:[%s3 + $0x2c] sm:$0xf] %vm723, %v662
  %736 = vst.msk [vmem:[%s3 + $0x30] sm:$0xf] %vm723, %v663
  %737 = vst.msk [vmem:[%s3 + $0x34] sm:$0xf] %vm723, %v664
  %738 = vst.msk [vmem:[%s3 + $0x38] sm:$0xf] %vm723, %v665
  %739 = vst.msk [vmem:[%s3 + $0x3c] sm:$0xf] %vm723, %v666
  %740 = vst.msk [vmem:[%s3 + $0x40] sm:$0xf] %vm723, %v667
  %741 = vst.msk [vmem:[%s3 + $0x44] sm:$0xf] %vm723, %v668
  %742 = vst.msk [vmem:[%s3 + $0x48] sm:$0xf] %vm723, %v669
  %743 = vst.msk [vmem:[%s3 + $0x4c] sm:$0xf] %vm723, %v670
  %744 = vst.msk [vmem:[%s3 + $0x50] sm:$0xf] %vm723, %v671
  %745 = vst.msk [vmem:[%s3 + $0x54] sm:$0xf] %vm723, %v672
  %746 = vst.msk [vmem:[%s3 + $0x58] sm:$0xf] %vm723, %v673
  %747 = vst.msk [vmem:[%s3 + $0x5c] sm:$0xf] %vm723, %v674
  %748 = vst.msk [vmem:[%s3 + $0x60] sm:$0xf] %vm723, %v675
  %749 = vst.msk [vmem:[%s3 + $0x64] sm:$0xf] %vm723, %v676
  %750 = vst.msk [vmem:[%s3 + $0x68] sm:$0xf] %vm723, %v677
  %751 = vst.msk [vmem:[%s3 + $0x6c] sm:$0xf] %vm723, %v678
  %752 = vst.msk [vmem:[%s3 + $0x70] sm:$0xf] %vm723, %v679
  %753 = vst.msk [vmem:[%s3 + $0x74] sm:$0xf] %vm723, %v680
  %754 = vst.msk [vmem:[%s3 + $0x78] sm:$0xf] %vm723, %v681
  %755 = vst.msk [vmem:[%s3 + $0x7c] sm:$0xf] %vm723, %v682
  %756 = vst.msk [vmem:[%s3 + $0x80] sm:$0xf] %vm723, %v683
  %757 = vst.msk [vmem:[%s3 + $0x84] sm:$0xf] %vm723, %v684
  %758 = vst.msk [vmem:[%s3 + $0x88] sm:$0xf] %vm723, %v685
  %759 = vst.msk [vmem:[%s3 + $0x8c] sm:$0xf] %vm723, %v686
  // Predicated region
  $region14: #{dqn_conv_forward.4} parent=0 // pred_check
    _
  $region15: #{dqn_conv_forward.4} parent=0 // pred_check_branch
    %761 = sbr.rel (0) target = $region17
  $region16: #{dqn_conv_forward.4} parent=0 // pred_region
    _
  $region17: #{dqn_conv_forward.4} parent=0 // pred_fallthru
    _
  // Predicated region
  $region18: #{dqn_conv_forward.4} parent=0 // pred_check
    _
  $region19: #{dqn_conv_forward.4} parent=0 // pred_check_branch
    %763 = sbr.rel (0) target = $region21
  $region20: #{dqn_conv_forward.4} parent=0 // pred_region
    _
  $region21: #{dqn_conv_forward.4} parent=0 // pred_fallthru
    _

// kernel: dqn_conv_forward.5
$region0: #{dqn_conv_forward.5}
  #allocation0 [shape = 'u32[]', space=smem, size = 0x4, offset = 0x4, fixed_abs, tag = 'smem constant byte address 0x4 - core index']
  #allocation1 [shape = 'u32[144,128]{1,0:T(1,128)}', space=vmem, size = 0x12000, scoped, tag = 'internal scratch']
  %s0 = inlined_call_operand.vmem [shape: bf16[50,512], index: 0, kind: input, shape index: {}]
  %s1 = inlined_call_operand.vmem [shape: bf16[512,64], index: 1, kind: input, shape index: {}]
  %s2 = inlined_call_operand.vmem [shape: f32[1,64], index: 2, kind: input, shape index: {}]
  %s3 = inlined_call_operand.vmem [shape: bf16[50,64], index: 3, kind: output, shape index: {}]
  %s4 = sld [smem:[#allocation0]]
  $region22: #{dqn_conv_forward.5} parent=0
    _
  %s6 = ssub.s32 1, %s4
  %s7 = scalar_select 0, %s6, %s4
  // Predicated region
  $region2: #{dqn_conv_forward.5} parent=0 // pred_check
    _
  $region3: #{dqn_conv_forward.5} parent=0 // pred_check_branch
    %9 = sbr.rel (0) target = $region5
  $region4: #{dqn_conv_forward.5} parent=0 // pred_region
    _
  $region5: #{dqn_conv_forward.5} parent=0 // pred_fallthru
    _
  // Predicated region
  $region6: #{dqn_conv_forward.5} parent=0 // pred_check
    _
  $region7: #{dqn_conv_forward.5} parent=0 // pred_check_branch
    %11 = sbr.rel (0) target = $region9
  $region8: #{dqn_conv_forward.5} parent=0 // pred_region
    _
  $region9: #{dqn_conv_forward.5} parent=0 // pred_fallthru
    _
  // Predicated region
  $region10: #{dqn_conv_forward.5} parent=0 // pred_check
    _
  $region11: #{dqn_conv_forward.5} parent=0 // pred_check_branch
    %13 = sbr.rel (0) target = $region13
  $region12: #{dqn_conv_forward.5} parent=0 // pred_region
    _
  $region13: #{dqn_conv_forward.5} parent=0 // pred_fallthru
    _
  %v15 = vld [vmem:[%s0] sm:$0xff]
  %v16 = vld [vmem:[%s0 + $0x8] sm:$0xff]
  %v17 = vld [vmem:[%s0 + $0x10] sm:$0xff]
  %v18 = vld [vmem:[%s0 + $0x18] sm:$0xff]
  %v19 = vld [vmem:[%s0 + $0x20] sm:$0xff]
  %v20 = vld [vmem:[%s0 + $0x28] sm:$0xff]
  %v21 = vld [vmem:[%s0 + $0x30] sm:$0xff]
  %v22 = vld [vmem:[%s0 + $0x38] sm:$0xff]
  %v23 = vld [vmem:[%s0 + $0x40] sm:$0xff]
  %v24 = vld [vmem:[%s0 + $0x48] sm:$0xff]
  %v25 = vld [vmem:[%s0 + $0x50] sm:$0xff]
  %v26 = vld [vmem:[%s0 + $0x58] sm:$0xff]
  %v27 = vld [vmem:[%s0 + $0x60] sm:$0x11]
  %v28 = vld [vmem:[%s0 + $0x68] sm:$0x11]
  %v29 = vld [vmem:[%s1] sm:$0xf]
  %v30 = vld [vmem:[%s1 + $0x4] sm:$0xf]
  %v31 = vld [vmem:[%s1 + $0x8] sm:$0xf]
  %v32 = vld [vmem:[%s1 + $0xc] sm:$0xf]
  %v33 = vld [vmem:[%s1 + $0x10] sm:$0xf]
  %v34 = vld [vmem:[%s1 + $0x14] sm:$0xf]
  %v35 = vld [vmem:[%s1 + $0x18] sm:$0xf]
  %v36 = vld [vmem:[%s1 + $0x1c] sm:$0xf]
  %v37 = vld [vmem:[%s1 + $0x20] sm:$0xf]
  %v38 = vld [vmem:[%s1 + $0x24] sm:$0xf]
  %v39 = vld [vmem:[%s1 + $0x28] sm:$0xf]
  %v40 = vld [vmem:[%s1 + $0x2c] sm:$0xf]
  %v41 = vld [vmem:[%s1 + $0x30] sm:$0xf]
  %v42 = vld [vmem:[%s1 + $0x34] sm:$0xf]
  %v43 = vld [vmem:[%s1 + $0x38] sm:$0xf]
  %v44 = vld [vmem:[%s1 + $0x3c] sm:$0xf]
  %v45 = vld [vmem:[%s1 + $0x40] sm:$0xf]
  %v46 = vld [vmem:[%s1 + $0x44] sm:$0xf]
  %v47 = vld [vmem:[%s1 + $0x48] sm:$0xf]
  %v48 = vld [vmem:[%s1 + $0x4c] sm:$0xf]
  %v49 = vld [vmem:[%s1 + $0x50] sm:$0xf]
  %v50 = vld [vmem:[%s1 + $0x54] sm:$0xf]
  %v51 = vld [vmem:[%s1 + $0x58] sm:$0xf]
  %v52 = vld [vmem:[%s1 + $0x5c] sm:$0xf]
  %v53 = vld [vmem:[%s1 + $0x60] sm:$0xf]
  %v54 = vld [vmem:[%s1 + $0x64] sm:$0xf]
  %v55 = vld [vmem:[%s1 + $0x68] sm:$0xf]
  %v56 = vld [vmem:[%s1 + $0x6c] sm:$0xf]
  %v57 = vld [vmem:[%s1 + $0x70] sm:$0xf]
  %v58 = vld [vmem:[%s1 + $0x74] sm:$0xf]
  %v59 = vld [vmem:[%s1 + $0x78] sm:$0xf]
  %v60 = vld [vmem:[%s1 + $0x7c] sm:$0xf]
  %v61 = vld [vmem:[%s1 + $0x80] sm:$0xf]
  %v62 = vld [vmem:[%s1 + $0x84] sm:$0xf]
  %v63 = vld [vmem:[%s1 + $0x88] sm:$0xf]
  %v64 = vld [vmem:[%s1 + $0x8c] sm:$0xf]
  %v65 = vld [vmem:[%s1 + $0x90] sm:$0xf]
  %v66 = vld [vmem:[%s1 + $0x94] sm:$0xf]
  %v67 = vld [vmem:[%s1 + $0x98] sm:$0xf]
  %v68 = vld [vmem:[%s1 + $0x9c] sm:$0xf]
  %v69 = vld [vmem:[%s1 + $0xa0] sm:$0xf]
  %v70 = vld [vmem:[%s1 + $0xa4] sm:$0xf]
  %v71 = vld [vmem:[%s1 + $0xa8] sm:$0xf]
  %v72 = vld [vmem:[%s1 + $0xac] sm:$0xf]
  %v73 = vld [vmem:[%s1 + $0xb0] sm:$0xf]
  %v74 = vld [vmem:[%s1 + $0xb4] sm:$0xf]
  %v75 = vld [vmem:[%s1 + $0xb8] sm:$0xf]
  %v76 = vld [vmem:[%s1 + $0xbc] sm:$0xf]
  %v77 = vld [vmem:[%s1 + $0xc0] sm:$0xf]
  %v78 = vld [vmem:[%s1 + $0xc4] sm:$0xf]
  %v79 = vld [vmem:[%s1 + $0xc8] sm:$0xf]
  %v80 = vld [vmem:[%s1 + $0xcc] sm:$0xf]
  %v81 = vld [vmem:[%s1 + $0xd0] sm:$0xf]
  %v82 = vld [vmem:[%s1 + $0xd4] sm:$0xf]
  %v83 = vld [vmem:[%s1 + $0xd8] sm:$0xf]
  %v84 = vld [vmem:[%s1 + $0xdc] sm:$0xf]
  %v85 = vld [vmem:[%s1 + $0xe0] sm:$0xf]
  %v86 = vld [vmem:[%s1 + $0xe4] sm:$0xf]
  %v87 = vld [vmem:[%s1 + $0xe8] sm:$0xf]
  %v88 = vld [vmem:[%s1 + $0xec] sm:$0xf]
  %v89 = vld [vmem:[%s1 + $0xf0] sm:$0xf]
  %v90 = vld [vmem:[%s1 + $0xf4] sm:$0xf]
  %v91 = vld [vmem:[%s1 + $0xf8] sm:$0xf]
  %v92 = vld [vmem:[%s1 + $0xfc] sm:$0xf]
  %v93 = vld [vmem:[%s2] sm:$0x1]
  %v95 = vlaneseq
  %v96 = vshrl.u32 %v95, 7
  %v97 = vsub.s32 0, %v96
  %v98 = vrot.slane %v93, %v97
  %v114 = vunpack.c.l.b16 %v15
  %v115 = vunpack.c.h.b16 %v15
  %v116 = vunpack.c.l.b16 %v16
  %v117 = vunpack.c.h.b16 %v16
  %v118 = vunpack.c.l.b16 %v17
  %v119 = vunpack.c.h.b16 %v17
  %v120 = vunpack.c.l.b16 %v18
  %v121 = vunpack.c.h.b16 %v18
  %v122 = vunpack.c.l.b16 %v19
  %v123 = vunpack.c.h.b16 %v19
  %v124 = vunpack.c.l.b16 %v20
  %v125 = vunpack.c.h.b16 %v20
  %v126 = vunpack.c.l.b16 %v21
  %v127 = vunpack.c.h.b16 %v21
  %v128 = vunpack.c.l.b16 %v22
  %v129 = vunpack.c.h.b16 %v22
  %v130 = vunpack.c.l.b16 %v23
  %v131 = vunpack.c.h.b16 %v23
  %v132 = vunpack.c.l.b16 %v24
  %v133 = vunpack.c.h.b16 %v24
  %v134 = vunpack.c.l.b16 %v25
  %v135 = vunpack.c.h.b16 %v25
  %v136 = vunpack.c.l.b16 %v26
  %v137 = vunpack.c.h.b16 %v26
  %v138 = vunpack.c.l.b16 %v27
  %v139 = vunpack.c.h.b16 %v27
  %v140 = vunpack.c.l.b16 %v28
  %v141 = vunpack.c.h.b16 %v28
  %v142 = vpack.c.b16 %v118, %v114
  %v143 = vpack.c.b16 %v119, %v115
  %v144 = vpack.c.b16 %v120, %v116
  %v145 = vpack.c.b16 %v121, %v117
  %v146 = vpack.c.b16 %v126, %v122
  %v147 = vpack.c.b16 %v127, %v123
  %v148 = vpack.c.b16 %v128, %v124
  %v149 = vpack.c.b16 %v129, %v125
  %v150 = vpack.c.b16 %v134, %v130
  %v151 = vpack.c.b16 %v135, %v131
  %v152 = vpack.c.b16 %v136, %v132
  %v153 = vpack.c.b16 %v137, %v133
  %v154 = vpack.c.b16 %v138, %v138
  %v155 = vpack.c.b16 %v139, %v139
  %v156 = vpack.c.b16 %v140, %v140
  %v157 = vpack.c.b16 %v141, %v141
  %v238 = vunpack.c.l.b16 %v29
  %v239 = vunpack.c.l.b16 %v30
  %v240 = vunpack.c.l.b16 %v31
  %v241 = vunpack.c.l.b16 %v32
  %v242 = vunpack.c.l.b16 %v33
  %v243 = vunpack.c.l.b16 %v34
  %v244 = vunpack.c.l.b16 %v35
  %v245 = vunpack.c.l.b16 %v36
  %v246 = vunpack.c.l.b16 %v37
  %v247 = vunpack.c.l.b16 %v38
  %v248 = vunpack.c.l.b16 %v39
  %v249 = vunpack.c.l.b16 %v40
  %v250 = vunpack.c.l.b16 %v41
  %v251 = vunpack.c.l.b16 %v42
  %v252 = vunpack.c.l.b16 %v43
  %v253 = vunpack.c.l.b16 %v44
  %v254 = vunpack.c.l.b16 %v45
  %v255 = vunpack.c.l.b16 %v46
  %v256 = vunpack.c.l.b16 %v47
  %v257 = vunpack.c.l.b16 %v48
  %v258 = vunpack.c.l.b16 %v49
  %v259 = vunpack.c.l.b16 %v50
  %v260 = vunpack.c.l.b16 %v51
  %v261 = vunpack.c.l.b16 %v52
  %v262 = vunpack.c.l.b16 %v53
  %v263 = vunpack.c.l.b16 %v54
  %v264 = vunpack.c.l.b16 %v55
  %v265 = vunpack.c.l.b16 %v56
  %v266 = vunpack.c.l.b16 %v57
  %v267 = vunpack.c.l.b16 %v58
  %v268 = vunpack.c.l.b16 %v59
  %v269 = vunpack.c.l.b16 %v60
  %v270 = vunpack.c.l.b16 %v61
  %v271 = vunpack.c.l.b16 %v62
  %v272 = vunpack.c.l.b16 %v63
  %v273 = vunpack.c.l.b16 %v64
  %v274 = vunpack.c.l.b16 %v65
  %v275 = vunpack.c.l.b16 %v66
  %v276 = vunpack.c.l.b16 %v67
  %v277 = vunpack.c.l.b16 %v68
  %v278 = vunpack.c.l.b16 %v69
  %v279 = vunpack.c.l.b16 %v70
  %v280 = vunpack.c.l.b16 %v71
  %v281 = vunpack.c.l.b16 %v72
  %v282 = vunpack.c.l.b16 %v73
  %v283 = vunpack.c.l.b16 %v74
  %v284 = vunpack.c.l.b16 %v75
  %v285 = vunpack.c.l.b16 %v76
  %v286 = vunpack.c.l.b16 %v77
  %v287 = vunpack.c.l.b16 %v78
  %v288 = vunpack.c.l.b16 %v79
  %v289 = vunpack.c.l.b16 %v80
  %v290 = vunpack.c.l.b16 %v81
  %v291 = vunpack.c.l.b16 %v82
  %v292 = vunpack.c.l.b16 %v83
  %v293 = vunpack.c.l.b16 %v84
  %v294 = vunpack.c.l.b16 %v85
  %v295 = vunpack.c.l.b16 %v86
  %v296 = vunpack.c.l.b16 %v87
  %v297 = vunpack.c.l.b16 %v88
  %v298 = vunpack.c.l.b16 %v89
  %v299 = vunpack.c.l.b16 %v90
  %v300 = vunpack.c.l.b16 %v91
  %v301 = vunpack.c.l.b16 %v92
  %v302 = vpack.c.b16 %v239, %v238
  %v303 = vpack.c.b16 %v241, %v240
  %v304 = vpack.c.b16 %v243, %v242
  %v305 = vpack.c.b16 %v245, %v244
  %v306 = vpack.c.b16 %v247, %v246
  %v307 = vpack.c.b16 %v249, %v248
  %v308 = vpack.c.b16 %v251, %v250
  %v309 = vpack.c.b16 %v253, %v252
  %v310 = vpack.c.b16 %v255, %v254
  %v311 = vpack.c.b16 %v257, %v256
  %v312 = vpack.c.b16 %v259, %v258
  %v313 = vpack.c.b16 %v261, %v260
  %v314 = vpack.c.b16 %v263, %v262
  %v315 = vpack.c.b16 %v265, %v264
  %v316 = vpack.c.b16 %v267, %v266
  %v317 = vpack.c.b16 %v269, %v268
  %v318 = vpack.c.b16 %v271, %v270
  %v319 = vpack.c.b16 %v273, %v272
  %v320 = vpack.c.b16 %v275, %v274
  %v321 = vpack.c.b16 %v277, %v276
  %v322 = vpack.c.b16 %v279, %v278
  %v323 = vpack.c.b16 %v281, %v280
  %v324 = vpack.c.b16 %v283, %v282
  %v325 = vpack.c.b16 %v285, %v284
  %v326 = vpack.c.b16 %v287, %v286
  %v327 = vpack.c.b16 %v289, %v288
  %v328 = vpack.c.b16 %v291, %v290
  %v329 = vpack.c.b16 %v293, %v292
  %v330 = vpack.c.b16 %v295, %v294
  %v331 = vpack.c.b16 %v297, %v296
  %v332 = vpack.c.b16 %v299, %v298
  %v333 = vpack.c.b16 %v301, %v300
  %366 = vmatprep.subr.bf16.mxu0 0
  %367 = vmatpush1.bf16.msra.mxu0 %v302
  %368 = vmatprep.subr.bf16.mxu0 0
  %369 = vmatpush1.bf16.msra.mxu0 %v303
  %370 = vmatprep.subr.bf16.mxu0 0
  %371 = vmatpush1.bf16.msra.mxu0 %v304
  %372 = vmatprep.subr.bf16.mxu0 0
  %373 = vmatpush1.bf16.msra.mxu0 %v305
  %374 = vmatprep.subr.bf16.mxu0 0
  %375 = vmatpush1.bf16.msra.mxu0 %v306
  %376 = vmatprep.subr.bf16.mxu0 0
  %377 = vmatpush1.bf16.msra.mxu0 %v307
  %378 = vmatprep.subr.bf16.mxu0 0
  %379 = vmatpush1.bf16.msra.mxu0 %v308
  %380 = vmatprep.subr.bf16.mxu0 0
  %381 = vmatpush1.bf16.msra.mxu0 %v309
  %382 = vmatprep.subr.bf16.mxu0 0
  %383 = vmatpush1.bf16.msra.mxu0 %v310
  %384 = vmatprep.subr.bf16.mxu0 0
  %385 = vmatpush1.bf16.msra.mxu0 %v311
  %386 = vmatprep.subr.bf16.mxu0 0
  %387 = vmatpush1.bf16.msra.mxu0 %v312
  %388 = vmatprep.subr.bf16.mxu0 0
  %389 = vmatpush1.bf16.msra.mxu0 %v313
  %390 = vmatprep.subr.bf16.mxu0 0
  %391 = vmatpush1.bf16.msra.mxu0 %v314
  %392 = vmatprep.subr.bf16.mxu0 0
  %393 = vmatpush1.bf16.msra.mxu0 %v315
  %394 = vmatprep.subr.bf16.mxu0 0
  %395 = vmatpush1.bf16.msra.mxu0 %v316
  %396 = vmatprep.subr.bf16.mxu0 0
  %397 = vmatpush1.bf16.msra.mxu0 %v317
  %398 = vmatprep.mubr.bf16.mxu0 %v143
  %399 = vmatmul.mubr.bf16.gmra.mrb[0].mxu0 %v142
  %v400 = vpop.f32.mrb[0].mxu0
  %v401 = vadd.f32 %v98, %v400
  %v402 = vpop.f32.mrb[0].mxu0
  %v403 = vpop.f32.mrb[0].mxu0
  %v404 = vadd.f32 %v98, %v403
  %v405 = vpop.f32.mrb[0].mxu0
  %406 = vmatprep.mubr.bf16.mxu0 %v147
  %407 = vmatmul.mubr.bf16.gmra.mrb[0].mxu0 %v146
  %v408 = vpop.f32.mrb[0].mxu0
  %v409 = vadd.f32 %v98, %v408
  %v410 = vpop.f32.mrb[0].mxu0
  %v411 = vpop.f32.mrb[0].mxu0
  %v412 = vadd.f32 %v98, %v411
  %v413 = vpop.f32.mrb[0].mxu0
  %414 = vmatprep.mubr.bf16.mxu0 %v151
  %415 = vmatmul.mubr.bf16.gmra.mrb[0].mxu0 %v150
  %v416 = vpop.f32.mrb[0].mxu0
  %v417 = vadd.f32 %v98, %v416
  %v418 = vpop.f32.mrb[0].mxu0
  %v419 = vpop.f32.mrb[0].mxu0
  %v420 = vadd.f32 %v98, %v419
  %v421 = vpop.f32.mrb[0].mxu0
  %422 = vmatprep.mubr.bf16.mxu0 %v155
  %423 = vmatmul.mubr.bf16.gmra.mrb[0].mxu0 %v154
  %v424 = vpop.f32.mrb[0].mxu0
  %v425 = vadd.f32 %v98, %v424
  %v426 = vpop.f32.mrb[0].mxu0
  %v427 = vpop.f32.mrb[0].mxu0
  %v428 = vpop.f32.mrb[0].mxu0
  %429 = vdwg.mxu0
  %430 = vmatprep.subr.bf16.mxu0 0
  %431 = vmatpush1.bf16.msra.mxu0 %v318
  %432 = vmatprep.subr.bf16.mxu0 0
  %433 = vmatpush1.bf16.msra.mxu0 %v319
  %434 = vmatprep.subr.bf16.mxu0 0
  %435 = vmatpush1.bf16.msra.mxu0 %v320
  %436 = vmatprep.subr.bf16.mxu0 0
  %437 = vmatpush1.bf16.msra.mxu0 %v321
  %438 = vmatprep.subr.bf16.mxu0 0
  %439 = vmatpush1.bf16.msra.mxu0 %v322
  %440 = vmatprep.subr.bf16.mxu0 0
  %441 = vmatpush1.bf16.msra.mxu0 %v323
  %442 = vmatprep.subr.bf16.mxu0 0
  %443 = vmatpush1.bf16.msra.mxu0 %v324
  %444 = vmatprep.subr.bf16.mxu0 0
  %445 = vmatpush1.bf16.msra.mxu0 %v325
  %446 = vmatprep.subr.bf16.mxu0 0
  %447 = vmatpush1.bf16.msra.mxu0 %v326
  %448 = vmatprep.subr.bf16.mxu0 0
  %449 = vmatpush1.bf16.msra.mxu0 %v327
  %450 = vmatprep.subr.bf16.mxu0 0
  %451 = vmatpush1.bf16.msra.mxu0 %v328
  %452 = vmatprep.subr.bf16.mxu0 0
  %453 = vmatpush1.bf16.msra.mxu0 %v329
  %454 = vmatprep.subr.bf16.mxu0 0
  %455 = vmatpush1.bf16.msra.mxu0 %v330
  %456 = vmatprep.subr.bf16.mxu0 0
  %457 = vmatpush1.bf16.msra.mxu0 %v331
  %458 = vmatprep.subr.bf16.mxu0 0
  %459 = vmatpush1.bf16.msra.mxu0 %v332
  %460 = vmatprep.subr.bf16.mxu0 0
  %461 = vmatpush1.bf16.msra.mxu0 %v333
  %462 = vmatprep.mubr.bf16.mxu0 %v145
  %463 = vmatmul.mubr.bf16.gmra.mrb[0].mxu0 %v144
  %v464 = vpop.f32.mrb[0].mxu0
  %v465 = vadd.f32 %v401, %v464
  %v466 = vpop.f32.mrb[0].mxu0
  %v467 = vpop.f32.mrb[0].mxu0
  %v468 = vadd.f32 %v404, %v467
  %v469 = vpop.f32.mrb[0].mxu0
  %470 = vmatprep.mubr.bf16.mxu0 %v149
  %471 = vmatmul.mubr.bf16.gmra.mrb[0].mxu0 %v148
  %v472 = vpop.f32.mrb[0].mxu0
  %v473 = vadd.f32 %v409, %v472
  %v474 = vpop.f32.mrb[0].mxu0
  %v475 = vpop.f32.mrb[0].mxu0
  %v476 = vadd.f32 %v412, %v475
  %v477 = vpop.f32.mrb[0].mxu0
  %478 = vmatprep.mubr.bf16.mxu0 %v153
  %479 = vmatmul.mubr.bf16.gmra.mrb[0].mxu0 %v152
  %v480 = vpop.f32.mrb[0].mxu0
  %v481 = vadd.f32 %v417, %v480
  %v482 = vpop.f32.mrb[0].mxu0
  %v483 = vpop.f32.mrb[0].mxu0
  %v484 = vadd.f32 %v420, %v483
  %v485 = vpop.f32.mrb[0].mxu0
  %486 = vmatprep.mubr.bf16.mxu0 %v157
  %487 = vmatmul.mubr.bf16.gmra.mrb[0].mxu0 %v156
  %v488 = vpop.f32.mrb[0].mxu0
  %v489 = vadd.f32 %v425, %v488
  %v490 = vpop.f32.mrb[0].mxu0
  %v491 = vpop.f32.mrb[0].mxu0
  %v492 = vpop.f32.mrb[0].mxu0
  %493 = vdwg.mxu0
  %v494 = vmax.f32 %v465, 0.0
  %v495 = vmax.f32 %v468, 0.0
  %v496 = vmax.f32 %v473, 0.0
  %v497 = vmax.f32 %v476, 0.0
  %v498 = vmax.f32 %v481, 0.0
  %v499 = vmax.f32 %v484, 0.0
  %v500 = vmax.f32 %v489, 0.0
  %v501 = vpack.c.bf16 %v495, %v494
  %v502 = vpack.c.bf16 %v497, %v496
  %v503 = vpack.c.bf16 %v499, %v498
  %v504 = vpack.c.bf16 %v500, %v500
  %v509 = vunpack.c.l.b16 %v501
  %v510 = vunpack.c.h.b16 %v501
  %v511 = vunpack.c.l.b16 %v502
  %v512 = vunpack.c.h.b16 %v502
  %v513 = vunpack.c.l.b16 %v503
  %v514 = vunpack.c.h.b16 %v503
  %v515 = vunpack.c.l.b16 %v504
  %v516 = vpack.c.b16 %v509, %v509
  %v517 = vpack.c.b16 %v510, %v510
  %v518 = vpack.c.b16 %v511, %v511
  %v519 = vpack.c.b16 %v512, %v512
  %v520 = vpack.c.b16 %v513, %v513
  %v521 = vpack.c.b16 %v514, %v514
  %v522 = vpack.c.b16 %v515, %v515
  %vm530 = vcmask 519168
  %531 = vst.msk [vmem:[%s3] sm:$0xf] %vm530, %v516
  %532 = vst.msk [vmem:[%s3 + $0x4] sm:$0xf] %vm530, %v517
  %533 = vst.msk [vmem:[%s3 + $0x8] sm:$0xf] %vm530, %v518
  %534 = vst.msk [vmem:[%s3 + $0xc] sm:$0xf] %vm530, %v519
  %535 = vst.msk [vmem:[%s3 + $0x10] sm:$0xf] %vm530, %v520
  %536 = vst.msk [vmem:[%s3 + $0x14] sm:$0xf] %vm530, %v521
  %vm537 = vcmask 516096
  %538 = vst.msk [vmem:[%s3 + $0x18] sm:$0x1] %vm537, %v522
  // Predicated region
  $region14: #{dqn_conv_forward.5} parent=0 // pred_check
    _
  $region15: #{dqn_conv_forward.5} parent=0 // pred_check_branch
    %540 = sbr.rel (0) target = $region17
  $region16: #{dqn_conv_forward.5} parent=0 // pred_region
    _
  $region17: #{dqn_conv_forward.5} parent=0 // pred_fallthru
    _
  // Predicated region
  $region18: #{dqn_conv_forward.5} parent=0 // pred_check
    _
  $region19: #{dqn_conv_forward.5} parent=0 // pred_check_branch
    %542 = sbr.rel (0) target = $region21
  $region20: #{dqn_conv_forward.5} parent=0 // pred_region
    _
  $region21: #{dqn_conv_forward.5} parent=0 // pred_fallthru
    _

// kernel: dqn_conv_forward.6
$region0: #{dqn_conv_forward.6}
  #allocation0 [shape = 'u32[]', space=smem, size = 0x4, offset = 0x4, fixed_abs, tag = 'smem constant byte address 0x4 - core index']
  #allocation1 [shape = 'u32[144,128]{1,0:T(1,128)}', space=vmem, size = 0x12000, scoped, tag = 'internal scratch']
  %s0 = inlined_call_operand.vmem [shape: bf16[18,576], index: 0, kind: input, shape index: {}]
  %s1 = inlined_call_operand.vmem [shape: bf16[576,64], index: 1, kind: input, shape index: {}]
  %s2 = inlined_call_operand.vmem [shape: f32[1,64], index: 2, kind: input, shape index: {}]
  %s3 = inlined_call_operand.vmem [shape: bf16[18,64], index: 3, kind: output, shape index: {}]
  %s4 = sld [smem:[#allocation0]]
  $region22: #{dqn_conv_forward.6} parent=0
    _
  %s6 = ssub.s32 1, %s4
  %s7 = scalar_select 0, %s6, %s4
  // Predicated region
  $region2: #{dqn_conv_forward.6} parent=0 // pred_check
    _
  $region3: #{dqn_conv_forward.6} parent=0 // pred_check_branch
    %9 = sbr.rel (0) target = $region5
  $region4: #{dqn_conv_forward.6} parent=0 // pred_region
    _
  $region5: #{dqn_conv_forward.6} parent=0 // pred_fallthru
    _
  // Predicated region
  $region6: #{dqn_conv_forward.6} parent=0 // pred_check
    _
  $region7: #{dqn_conv_forward.6} parent=0 // pred_check_branch
    %11 = sbr.rel (0) target = $region9
  $region8: #{dqn_conv_forward.6} parent=0 // pred_region
    _
  $region9: #{dqn_conv_forward.6} parent=0 // pred_fallthru
    _
  // Predicated region
  $region10: #{dqn_conv_forward.6} parent=0 // pred_check
    _
  $region11: #{dqn_conv_forward.6} parent=0 // pred_check_branch
    %13 = sbr.rel (0) target = $region13
  $region12: #{dqn_conv_forward.6} parent=0 // pred_region
    _
  $region13: #{dqn_conv_forward.6} parent=0 // pred_fallthru
    _
  %v15 = vld [vmem:[%s0] sm:$0xff]
  %v16 = vld [vmem:[%s0 + $0x8] sm:$0xff]
  %v17 = vld [vmem:[%s0 + $0x10] sm:$0xf]
  %v18 = vld [vmem:[%s0 + $0x14] sm:$0xff]
  %v19 = vld [vmem:[%s0 + $0x1c] sm:$0xff]
  %v20 = vld [vmem:[%s0 + $0x24] sm:$0xf]
  %v21 = vld [vmem:[%s0 + $0x28] sm:$0x11]
  %v22 = vld [vmem:[%s0 + $0x30] sm:$0x11]
  %v23 = vld [vmem:[%s0 + $0x38] sm:$0x1]
  %v24 = vld [vmem:[%s1] sm:$0xf]
  %v25 = vld [vmem:[%s1 + $0x4] sm:$0xf]
  %v26 = vld [vmem:[%s1 + $0x8] sm:$0xf]
  %v27 = vld [vmem:[%s1 + $0xc] sm:$0xf]
  %v28 = vld [vmem:[%s1 + $0x10] sm:$0xf]
  %v29 = vld [vmem:[%s1 + $0x14] sm:$0xf]
  %v30 = vld [vmem:[%s1 + $0x18] sm:$0xf]
  %v31 = vld [vmem:[%s1 + $0x1c] sm:$0xf]
  %v32 = vld [vmem:[%s1 + $0x20] sm:$0xf]
  %v33 = vld [vmem:[%s1 + $0x24] sm:$0xf]
  %v34 = vld [vmem:[%s1 + $0x28] sm:$0xf]
  %v35 = vld [vmem:[%s1 + $0x2c] sm:$0xf]
  %v36 = vld [vmem:[%s1 + $0x30] sm:$0xf]
  %v37 = vld [vmem:[%s1 + $0x34] sm:$0xf]
  %v38 = vld [vmem:[%s1 + $0x38] sm:$0xf]
  %v39 = vld [vmem:[%s1 + $0x3c] sm:$0xf]
  %v40 = vld [vmem:[%s1 + $0x40] sm:$0xf]
  %v41 = vld [vmem:[%s1 + $0x44] sm:$0xf]
  %v42 = vld [vmem:[%s1 + $0x48] sm:$0xf]
  %v43 = vld [vmem:[%s1 + $0x4c] sm:$0xf]
  %v44 = vld [vmem:[%s1 + $0x50] sm:$0xf]
  %v45 = vld [vmem:[%s1 + $0x54] sm:$0xf]
  %v46 = vld [vmem:[%s1 + $0x58] sm:$0xf]
  %v47 = vld [vmem:[%s1 + $0x5c] sm:$0xf]
  %v48 = vld [vmem:[%s1 + $0x60] sm:$0xf]
  %v49 = vld [vmem:[%s1 + $0x64] sm:$0xf]
  %v50 = vld [vmem:[%s1 + $0x68] sm:$0xf]
  %v51 = vld [vmem:[%s1 + $0x6c] sm:$0xf]
  %v52 = vld [vmem:[%s1 + $0x70] sm:$0xf]
  %v53 = vld [vmem:[%s1 + $0x74] sm:$0xf]
  %v54 = vld [vmem:[%s1 + $0x78] sm:$0xf]
  %v55 = vld [vmem:[%s1 + $0x7c] sm:$0xf]
  %v56 = vld [vmem:[%s1 + $0x80] sm:$0xf]
  %v57 = vld [vmem:[%s1 + $0x84] sm:$0xf]
  %v58 = vld [vmem:[%s1 + $0x88] sm:$0xf]
  %v59 = vld [vmem:[%s1 + $0x8c] sm:$0xf]
  %v60 = vld [vmem:[%s1 + $0x90] sm:$0xf]
  %v61 = vld [vmem:[%s1 + $0x94] sm:$0xf]
  %v62 = vld [vmem:[%s1 + $0x98] sm:$0xf]
  %v63 = vld [vmem:[%s1 + $0x9c] sm:$0xf]
  %v64 = vld [vmem:[%s1 + $0xa0] sm:$0xf]
  %v65 = vld [vmem:[%s1 + $0xa4] sm:$0xf]
  %v66 = vld [vmem:[%s1 + $0xa8] sm:$0xf]
  %v67 = vld [vmem:[%s1 + $0xac] sm:$0xf]
  %v68 = vld [vmem:[%s1 + $0xb0] sm:$0xf]
  %v69 = vld [vmem:[%s1 + $0xb4] sm:$0xf]
  %v70 = vld [vmem:[%s1 + $0xb8] sm:$0xf]
  %v71 = vld [vmem:[%s1 + $0xbc] sm:$0xf]
  %v72 = vld [vmem:[%s1 + $0xc0] sm:$0xf]
  %v73 = vld [vmem:[%s1 + $0xc4] sm:$0xf]
  %v74 = vld [vmem:[%s1 + $0xc8] sm:$0xf]
  %v75 = vld [vmem:[%s1 + $0xcc] sm:$0xf]
  %v76 = vld [vmem:[%s1 + $0xd0] sm:$0xf]
  %v77 = vld [vmem:[%s1 + $0xd4] sm:$0xf]
  %v78 = vld [vmem:[%s1 + $0xd8] sm:$0xf]
  %v79 = vld [vmem:[%s1 + $0xdc] sm:$0xf]
  %v80 = vld [vmem:[%s1 + $0xe0] sm:$0xf]
  %v81 = vld [vmem:[%s1 + $0xe4] sm:$0xf]
  %v82 = vld [vmem:[%s1 + $0xe8] sm:$0xf]
  %v83 = vld [vmem:[%s1 + $0xec] sm:$0xf]
  %v84 = vld [vmem:[%s1 + $0xf0] sm:$0xf]
  %v85 = vld [vmem:[%s1 + $0xf4] sm:$0xf]
  %v86 = vld [vmem:[%s1 + $0xf8] sm:$0xf]
  %v87 = vld [vmem:[%s1 + $0xfc] sm:$0xf]
  %v88 = vld [vmem:[%s1 + $0x100] sm:$0xf]
  %v89 = vld [vmem:[%s1 + $0x104] sm:$0xf]
  %v90 = vld [vmem:[%s1 + $0x108] sm:$0xf]
  %v91 = vld [vmem:[%s1 + $0x10c] sm:$0xf]
  %v92 = vld [vmem:[%s1 + $0x110] sm:$0xf]
  %v93 = vld [vmem:[%s1 + $0x114] sm:$0xf]
  %v94 = vld [vmem:[%s1 + $0x118] sm:$0xf]
  %v95 = vld [vmem:[%s1 + $0x11c] sm:$0xf]
  %v96 = vld [vmem:[%s2] sm:$0x1]
  %v98 = vlaneseq
  %v99 = vshrl.u32 %v98, 7
  %v100 = vsub.s32 0, %v99
  %v101 = vrot.slane %v96, %v100
  %v112 = vunpack.c.l.b16 %v15
  %v113 = vunpack.c.h.b16 %v15
  %v114 = vunpack.c.l.b16 %v16
  %v115 = vunpack.c.h.b16 %v16
  %v116 = vunpack.c.l.b16 %v17
  %v117 = vunpack.c.l.b16 %v18
  %v118 = vunpack.c.h.b16 %v18
  %v119 = vunpack.c.l.b16 %v19
  %v120 = vunpack.c.h.b16 %v19
  %v121 = vunpack.c.l.b16 %v20
  %v122 = vunpack.c.l.b16 %v21
  %v123 = vunpack.c.h.b16 %v21
  %v124 = vunpack.c.l.b16 %v22
  %v125 = vunpack.c.h.b16 %v22
  %v126 = vunpack.c.l.b16 %v23
  %v127 = vpack.c.b16 %v117, %v112
  %v128 = vpack.c.b16 %v118, %v113
  %v129 = vpack.c.b16 %v119, %v114
  %v130 = vpack.c.b16 %v120, %v115
  %v131 = vpack.c.b16 %v121, %v116
  %v132 = vpack.c.b16 %v122, %v122
  %v133 = vpack.c.b16 %v123, %v123
  %v134 = vpack.c.b16 %v124, %v124
  %v135 = vpack.c.b16 %v125, %v125
  %v136 = vpack.c.b16 %v126, %v126
  %v217 = vunpack.c.l.b16 %v24
  %v218 = vunpack.c.l.b16 %v25
  %v219 = vunpack.c.l.b16 %v26
  %v220 = vunpack.c.l.b16 %v27
  %v221 = vunpack.c.l.b16 %v28
  %v222 = vunpack.c.l.b16 %v29
  %v223 = vunpack.c.l.b16 %v30
  %v224 = vunpack.c.l.b16 %v31
  %v225 = vunpack.c.l.b16 %v32
  %v226 = vunpack.c.l.b16 %v33
  %v227 = vunpack.c.l.b16 %v34
  %v228 = vunpack.c.l.b16 %v35
  %v229 = vunpack.c.l.b16 %v36
  %v230 = vunpack.c.l.b16 %v37
  %v231 = vunpack.c.l.b16 %v38
  %v232 = vunpack.c.l.b16 %v39
  %v233 = vunpack.c.l.b16 %v40
  %v234 = vunpack.c.l.b16 %v41
  %v235 = vunpack.c.l.b16 %v42
  %v236 = vunpack.c.l.b16 %v43
  %v237 = vunpack.c.l.b16 %v44
  %v238 = vunpack.c.l.b16 %v45
  %v239 = vunpack.c.l.b16 %v46
  %v240 = vunpack.c.l.b16 %v47
  %v241 = vunpack.c.l.b16 %v48
  %v242 = vunpack.c.l.b16 %v49
  %v243 = vunpack.c.l.b16 %v50
  %v244 = vunpack.c.l.b16 %v51
  %v245 = vunpack.c.l.b16 %v52
  %v246 = vunpack.c.l.b16 %v53
  %v247 = vunpack.c.l.b16 %v54
  %v248 = vunpack.c.l.b16 %v55
  %v249 = vunpack.c.l.b16 %v56
  %v250 = vunpack.c.l.b16 %v57
  %v251 = vunpack.c.l.b16 %v58
  %v252 = vunpack.c.l.b16 %v59
  %v253 = vunpack.c.l.b16 %v60
  %v254 = vunpack.c.l.b16 %v61
  %v255 = vunpack.c.l.b16 %v62
  %v256 = vunpack.c.l.b16 %v63
  %v257 = vunpack.c.l.b16 %v64
  %v258 = vunpack.c.l.b16 %v65
  %v259 = vunpack.c.l.b16 %v66
  %v260 = vunpack.c.l.b16 %v67
  %v261 = vunpack.c.l.b16 %v68
  %v262 = vunpack.c.l.b16 %v69
  %v263 = vunpack.c.l.b16 %v70
  %v264 = vunpack.c.l.b16 %v71
  %v265 = vunpack.c.l.b16 %v72
  %v266 = vunpack.c.l.b16 %v73
  %v267 = vunpack.c.l.b16 %v74
  %v268 = vunpack.c.l.b16 %v75
  %v269 = vunpack.c.l.b16 %v76
  %v270 = vunpack.c.l.b16 %v77
  %v271 = vunpack.c.l.b16 %v78
  %v272 = vunpack.c.l.b16 %v79
  %v273 = vunpack.c.l.b16 %v80
  %v274 = vunpack.c.l.b16 %v81
  %v275 = vunpack.c.l.b16 %v82
  %v276 = vunpack.c.l.b16 %v83
  %v277 = vunpack.c.l.b16 %v84
  %v278 = vunpack.c.l.b16 %v85
  %v279 = vunpack.c.l.b16 %v86
  %v280 = vunpack.c.l.b16 %v87
  %v281 = vunpack.c.l.b16 %v88
  %v282 = vunpack.c.l.b16 %v89
  %v283 = vunpack.c.l.b16 %v90
  %v284 = vunpack.c.l.b16 %v91
  %v285 = vunpack.c.l.b16 %v92
  %v286 = vunpack.c.l.b16 %v93
  %v287 = vunpack.c.l.b16 %v94
  %v288 = vunpack.c.l.b16 %v95
  %v289 = vpack.c.b16 %v218, %v217
  %v290 = vpack.c.b16 %v220, %v219
  %v291 = vpack.c.b16 %v222, %v221
  %v292 = vpack.c.b16 %v224, %v223
  %v293 = vpack.c.b16 %v226, %v225
  %v294 = vpack.c.b16 %v228, %v227
  %v295 = vpack.c.b16 %v230, %v229
  %v296 = vpack.c.b16 %v232, %v231
  %v297 = vpack.c.b16 %v234, %v233
  %v298 = vpack.c.b16 %v236, %v235
  %v299 = vpack.c.b16 %v238, %v237
  %v300 = vpack.c.b16 %v240, %v239
  %v301 = vpack.c.b16 %v242, %v241
  %v302 = vpack.c.b16 %v244, %v243
  %v303 = vpack.c.b16 %v246, %v245
  %v304 = vpack.c.b16 %v248, %v247
  %v305 = vpack.c.b16 %v250, %v249
  %v306 = vpack.c.b16 %v252, %v251
  %v307 = vpack.c.b16 %v254, %v253
  %v308 = vpack.c.b16 %v256, %v255
  %v309 = vpack.c.b16 %v258, %v257
  %v310 = vpack.c.b16 %v260, %v259
  %v311 = vpack.c.b16 %v262, %v261
  %v312 = vpack.c.b16 %v264, %v263
  %v313 = vpack.c.b16 %v266, %v265
  %v314 = vpack.c.b16 %v268, %v267
  %v315 = vpack.c.b16 %v270, %v269
  %v316 = vpack.c.b16 %v272, %v271
  %v317 = vpack.c.b16 %v274, %v273
  %v318 = vpack.c.b16 %v276, %v275
  %v319 = vpack.c.b16 %v278, %v277
  %v320 = vpack.c.b16 %v280, %v279
  %v321 = vpack.c.b16 %v282, %v281
  %v322 = vpack.c.b16 %v284, %v283
  %v323 = vpack.c.b16 %v286, %v285
  %v324 = vpack.c.b16 %v288, %v287
  %vm361 = vcmask 523264
  %v363 = vsel %vm361, %v131, 0
  %v366 = vsel %vm361, %v136, 0
  %368 = vmatprep.subr.bf16.mxu0 0
  %369 = vmatpush1.bf16.msra.mxu0 %v289
  %370 = vmatprep.subr.bf16.mxu0 0
  %371 = vmatpush1.bf16.msra.mxu0 %v290
  %372 = vmatprep.subr.bf16.mxu0 0
  %373 = vmatpush1.bf16.msra.mxu0 %v291
  %374 = vmatprep.subr.bf16.mxu0 0
  %375 = vmatpush1.bf16.msra.mxu0 %v292
  %376 = vmatprep.subr.bf16.mxu0 0
  %377 = vmatpush1.bf16.msra.mxu0 %v293
  %378 = vmatprep.subr.bf16.mxu0 0
  %379 = vmatpush1.bf16.msra.mxu0 %v294
  %380 = vmatprep.subr.bf16.mxu0 0
  %381 = vmatpush1.bf16.msra.mxu0 %v295
  %382 = vmatprep.subr.bf16.mxu0 0
  %383 = vmatpush1.bf16.msra.mxu0 %v296
  %384 = vmatprep.subr.bf16.mxu0 0
  %385 = vmatpush1.bf16.msra.mxu0 %v297
  %386 = vmatprep.subr.bf16.mxu0 0
  %387 = vmatpush1.bf16.msra.mxu0 %v298
  %388 = vmatprep.subr.bf16.mxu0 0
  %389 = vmatpush1.bf16.msra.mxu0 %v299
  %390 = vmatprep.subr.bf16.mxu0 0
  %391 = vmatpush1.bf16.msra.mxu0 %v300
  %392 = vmatprep.subr.bf16.mxu0 0
  %393 = vmatpush1.bf16.msra.mxu0 %v301
  %394 = vmatprep.subr.bf16.mxu0 0
  %395 = vmatpush1.bf16.msra.mxu0 %v302
  %396 = vmatprep.subr.bf16.mxu0 0
  %397 = vmatpush1.bf16.msra.mxu0 %v303
  %398 = vmatprep.subr.bf16.mxu0 0
  %399 = vmatpush1.bf16.msra.mxu0 %v304
  %400 = vmatprep.mubr.bf16.mxu0 %v128
  %401 = vmatmul.mubr.bf16.gmra.mrb[0].mxu0 %v127
  %v402 = vpop.f32.mrb[0].mxu0
  %v403 = vadd.f32 %v101, %v402
  %v404 = vpop.f32.mrb[0].mxu0
  %v405 = vpop.f32.mrb[0].mxu0
  %v406 = vadd.f32 %v101, %v405
  %v407 = vpop.f32.mrb[0].mxu0
  %408 = vmatprep.mubr.bf16.mxu0 %v133
  %409 = vmatmul.mubr.bf16.gmra.mrb[0].mxu0 %v132
  %v410 = vpop.f32.mrb[0].mxu0
  %v411 = vadd.f32 %v101, %v410
  %v412 = vpop.f32.mrb[0].mxu0
  %v413 = vpop.f32.mrb[0].mxu0
  %v414 = vpop.f32.mrb[0].mxu0
  %415 = vdwg.mxu0
  %416 = vmatprep.subr.bf16.mxu0 0
  %417 = vmatpush1.bf16.msra.mxu0 %v305
  %418 = vmatprep.subr.bf16.mxu0 0
  %419 = vmatpush1.bf16.msra.mxu0 %v306
  %420 = vmatprep.subr.bf16.mxu0 0
  %421 = vmatpush1.bf16.msra.mxu0 %v307
  %422 = vmatprep.subr.bf16.mxu0 0
  %423 = vmatpush1.bf16.msra.mxu0 %v308
  %424 = vmatprep.subr.bf16.mxu0 0
  %425 = vmatpush1.bf16.msra.mxu0 %v309
  %426 = vmatprep.subr.bf16.mxu0 0
  %427 = vmatpush1.bf16.msra.mxu0 %v310
  %428 = vmatprep.subr.bf16.mxu0 0
  %429 = vmatpush1.bf16.msra.mxu0 %v311
  %430 = vmatprep.subr.bf16.mxu0 0
  %431 = vmatpush1.bf16.msra.mxu0 %v312
  %432 = vmatprep.subr.bf16.mxu0 0
  %433 = vmatpush1.bf16.msra.mxu0 %v313
  %434 = vmatprep.subr.bf16.mxu0 0
  %435 = vmatpush1.bf16.msra.mxu0 %v314
  %436 = vmatprep.subr.bf16.mxu0 0
  %437 = vmatpush1.bf16.msra.mxu0 %v315
  %438 = vmatprep.subr.bf16.mxu0 0
  %439 = vmatpush1.bf16.msra.mxu0 %v316
  %440 = vmatprep.subr.bf16.mxu0 0
  %441 = vmatpush1.bf16.msra.mxu0 %v317
  %442 = vmatprep.subr.bf16.mxu0 0
  %443 = vmatpush1.bf16.msra.mxu0 %v318
  %444 = vmatprep.subr.bf16.mxu0 0
  %445 = vmatpush1.bf16.msra.mxu0 %v319
  %446 = vmatprep.subr.bf16.mxu0 0
  %447 = vmatpush1.bf16.msra.mxu0 %v320
  %448 = vmatprep.mubr.bf16.mxu0 %v130
  %449 = vmatmul.mubr.bf16.gmra.mrb[0].mxu0 %v129
  %v450 = vpop.f32.mrb[0].mxu0
  %v451 = vadd.f32 %v403, %v450
  %v452 = vpop.f32.mrb[0].mxu0
  %v453 = vpop.f32.mrb[0].mxu0
  %v454 = vadd.f32 %v406, %v453
  %v455 = vpop.f32.mrb[0].mxu0
  %456 = vmatprep.mubr.bf16.mxu0 %v135
  %457 = vmatmul.mubr.bf16.gmra.mrb[0].mxu0 %v134
  %v458 = vpop.f32.mrb[0].mxu0
  %v459 = vadd.f32 %v411, %v458
  %v460 = vpop.f32.mrb[0].mxu0
  %v461 = vpop.f32.mrb[0].mxu0
  %v462 = vpop.f32.mrb[0].mxu0
  %463 = vdwg.mxu0
  %464 = vmatprep.subr.bf16.mxu0 0
  %465 = vmatpush1.bf16.msra.mxu0 %v321
  %466 = vmatprep.subr.bf16.mxu0 0
  %467 = vmatpush1.bf16.msra.mxu0 %v322
  %468 = vmatprep.subr.bf16.mxu0 0
  %469 = vmatpush1.bf16.msra.mxu0 %v323
  %470 = vmatprep.subr.bf16.mxu0 0
  %471 = vmatpush1.bf16.msra.mxu0 %v324
  %472 = vmatprep.subr.bf16.mxu0 0
  %473 = vmatpush1.bf16.msra.mxu0 0
  %474 = vmatprep.subr.bf16.mxu0 0
  %475 = vmatpush1.bf16.msra.mxu0 0
  %476 = vmatprep.subr.bf16.mxu0 0
  %477 = vmatpush1.bf16.msra.mxu0 0
  %478 = vmatprep.subr.bf16.mxu0 0
  %479 = vmatpush1.bf16.msra.mxu0 0
  %480 = vmatprep.subr.bf16.mxu0 0
  %481 = vmatpush1.bf16.msra.mxu0 0
  %482 = vmatprep.subr.bf16.mxu0 0
  %483 = vmatpush1.bf16.msra.mxu0 0
  %484 = vmatprep.subr.bf16.mxu0 0
  %485 = vmatpush1.bf16.msra.mxu0 0
  %486 = vmatprep.subr.bf16.mxu0 0
  %487 = vmatpush1.bf16.msra.mxu0 0
  %488 = vmatprep.subr.bf16.mxu0 0
  %489 = vmatpush1.bf16.msra.mxu0 0
  %490 = vmatprep.subr.bf16.mxu0 0
  %491 = vmatpush1.bf16.msra.mxu0 0
  %492 = vmatprep.subr.bf16.mxu0 0
  %493 = vmatpush1.bf16.msra.mxu0 0
  %494 = vmatprep.subr.bf16.mxu0 0
  %495 = vmatpush1.bf16.msra.mxu0 0
  %496 = vmatprep.mubr.bf16.mxu0 0
  %497 = vmatmul.mubr.bf16.gmra.mrb[0].mxu0 %v363
  %v498 = vpop.f32.mrb[0].mxu0
  %v499 = vadd.f32 %v451, %v498
  %v500 = vpop.f32.mrb[0].mxu0
  %v501 = vpop.f32.mrb[0].mxu0
  %v502 = vadd.f32 %v454, %v501
  %v503 = vpop.f32.mrb[0].mxu0
  %504 = vmatprep.mubr.bf16.mxu0 0
  %505 = vmatmul.mubr.bf16.gmra.mrb[0].mxu0 %v366
  %v506 = vpop.f32.mrb[0].mxu0
  %v507 = vadd.f32 %v459, %v506
  %v508 = vpop.f32.mrb[0].mxu0
  %v509 = vpop.f32.mrb[0].mxu0
  %v510 = vpop.f32.mrb[0].mxu0
  %511 = vdwg.mxu0
  %v512 = vmax.f32 %v499, 0.0
  %v513 = vmax.f32 %v502, 0.0
  %v514 = vmax.f32 %v507, 0.0
  %v515 = vpack.c.bf16 %v513, %v512
  %v516 = vpack.c.bf16 %v514, %v514
  %v519 = vunpack.c.l.b16 %v515
  %v520 = vunpack.c.h.b16 %v515
  %v521 = vunpack.c.l.b16 %v516
  %v522 = vpack.c.b16 %v519, %v519
  %v523 = vpack.c.b16 %v520, %v520
  %v524 = vpack.c.b16 %v521, %v521
  %vm528 = vcmask 519168
  %529 = vst.msk [vmem:[%s3] sm:$0xf] %vm528, %v522
  %530 = vst.msk [vmem:[%s3 + $0x4] sm:$0xf] %vm528, %v523
  %vm531 = vcmask 516096
  %532 = vst.msk [vmem:[%s3 + $0x8] sm:$0x1] %vm531, %v524
  // Predicated region
  $region14: #{dqn_conv_forward.6} parent=0 // pred_check
    _
  $region15: #{dqn_conv_forward.6} parent=0 // pred_check_branch
    %534 = sbr.rel (0) target = $region17
  $region16: #{dqn_conv_forward.6} parent=0 // pred_region
    _
  $region17: #{dqn_conv_forward.6} parent=0 // pred_fallthru
    _
  // Predicated region
  $region18: #{dqn_conv_forward.6} parent=0 // pred_check
    _
  $region19: #{dqn_conv_forward.6} parent=0 // pred_check_branch
    %536 = sbr.rel (0) target = $region21
  $region20: #{dqn_conv_forward.6} parent=0 // pred_region
    _
  $region21: #{dqn_conv_forward.6} parent=0 // pred_fallthru
    _

// kernel: dqn_conv_forward.7
$region0: #{dqn_conv_forward.7}
  #allocation0 [shape = 'u32[]', space=smem, size = 0x4, offset = 0x4, fixed_abs, tag = 'smem constant byte address 0x4 - core index']
  #allocation1 [shape = 'u32[144,128]{1,0:T(1,128)}', space=vmem, size = 0x12000, scoped, tag = 'internal scratch']
  %s0 = inlined_call_operand.vmem [shape: bf16[2,576], index: 0, kind: input, shape index: {}]
  %s1 = inlined_call_operand.vmem [shape: bf16[576,512], index: 1, kind: input, shape index: {}]
  %s2 = inlined_call_operand.vmem [shape: f32[1,512], index: 2, kind: input, shape index: {}]
  %s3 = inlined_call_operand.vmem [shape: bf16[512,6], index: 3, kind: input, shape index: {}]
  %s4 = inlined_call_operand.vmem [shape: f32[1,6], index: 4, kind: input, shape index: {}]
  %s5 = inlined_call_operand.hbm [shape: f32[2,6], index: 5, kind: output, shape index: {}]
  %s6 = sld [smem:[#allocation0]]
  $region30: #{dqn_conv_forward.7} parent=0
    _
  %s8 = ssub.s32 1, %s6
  %s9 = scalar_select 0, %s8, %s6
  $region1: #{dqn_conv_forward.7} parent=0
    #allocation2 [shape = 'u8[1024]{0}', space=vmem, size = 0x400, scoped, tag = 'output window, operand 0, single buffered']
    #allocation3 [shape = 's32[1]{0}', space=sflag, size = 0x4, scoped, tag = 'scoped memory for dqn_conv_forward.7']
    %10 = vsyncpa [#allocation3], 0
    // Predicated region
    $region2: #{dqn_conv_forward.7} parent=1 // pred_check
      _
    $region3: #{dqn_conv_forward.7} parent=1 // pred_check_branch
      %12 = sbr.rel (0) target = $region5
    $region4: #{dqn_conv_forward.7} parent=1 // pred_region
      _
    $region5: #{dqn_conv_forward.7} parent=1 // pred_fallthru
      _
    // Predicated region
    $region6: #{dqn_conv_forward.7} parent=1 // pred_check
      _
    $region7: #{dqn_conv_forward.7} parent=1 // pred_check_branch
      %14 = sbr.rel (0) target = $region9
    $region8: #{dqn_conv_forward.7} parent=1 // pred_region
      _
    $region9: #{dqn_conv_forward.7} parent=1 // pred_fallthru
      _
    // Predicated region
    $region10: #{dqn_conv_forward.7} parent=1 // pred_check
      _
    $region11: #{dqn_conv_forward.7} parent=1 // pred_check_branch
      %16 = sbr.rel (0) target = $region13
    $region12: #{dqn_conv_forward.7} parent=1 // pred_region
      _
    $region13: #{dqn_conv_forward.7} parent=1 // pred_fallthru
      _
    // Predicated region
    $region14: #{dqn_conv_forward.7} parent=1 // pred_check
      _
    $region15: #{dqn_conv_forward.7} parent=1 // pred_check_branch
      %18 = sbr.rel (0) target = $region17
    $region16: #{dqn_conv_forward.7} parent=1 // pred_region
      _
    $region17: #{dqn_conv_forward.7} parent=1 // pred_fallthru
      _
    // Predicated region
    $region18: #{dqn_conv_forward.7} parent=1 // pred_check
      _
    $region19: #{dqn_conv_forward.7} parent=1 // pred_check_branch
      %20 = sbr.rel (0) target = $region21
    $region20: #{dqn_conv_forward.7} parent=1 // pred_region
      _
    $region21: #{dqn_conv_forward.7} parent=1 // pred_fallthru
      _
    %v22 = vld [vmem:[%s0] sm:$0x1f]
    %v23 = vld [vmem:[%s1] sm:$0xff]
    %v24 = vld [vmem:[%s1 + $0x8] sm:$0xff]
    %v25 = vld [vmem:[%s1 + $0x10] sm:$0xff]
    %v26 = vld [vmem:[%s1 + $0x18] sm:$0xff]
    %v27 = vld [vmem:[%s1 + $0x20] sm:$0xff]
    %v28 = vld [vmem:[%s1 + $0x28] sm:$0xff]
    %v29 = vld [vmem:[%s1 + $0x30] sm:$0xff]
    %v30 = vld [vmem:[%s1 + $0x38] sm:$0xff]
    %v31 = vld [vmem:[%s1 + $0x40] sm:$0xff]
    %v32 = vld [vmem:[%s1 + $0x48] sm:$0xff]
    %v33 = vld [vmem:[%s1 + $0x50] sm:$0xff]
    %v34 = vld [vmem:[%s1 + $0x58] sm:$0xff]
    %v35 = vld [vmem:[%s1 + $0x60] sm:$0xff]
    %v36 = vld [vmem:[%s1 + $0x68] sm:$0xff]
    %v37 = vld [vmem:[%s1 + $0x70] sm:$0xff]
    %v38 = vld [vmem:[%s1 + $0x78] sm:$0xff]
    %v39 = vld [vmem:[%s1 + $0x80] sm:$0xff]
    %v40 = vld [vmem:[%s1 + $0x88] sm:$0xff]
    %v41 = vld [vmem:[%s1 + $0x90] sm:$0xff]
    %v42 = vld [vmem:[%s1 + $0x98] sm:$0xff]
    %v43 = vld [vmem:[%s1 + $0xa0] sm:$0xff]
    %v44 = vld [vmem:[%s1 + $0xa8] sm:$0xff]
    %v45 = vld [vmem:[%s1 + $0xb0] sm:$0xff]
    %v46 = vld [vmem:[%s1 + $0xb8] sm:$0xff]
    %v47 = vld [vmem:[%s1 + $0xc0] sm:$0xff]
    %v48 = vld [vmem:[%s1 + $0xc8] sm:$0xff]
    %v49 = vld [vmem:[%s1 + $0xd0] sm:$0xff]
    %v50 = vld [vmem:[%s1 + $0xd8] sm:$0xff]
    %v51 = vld [vmem:[%s1 + $0xe0] sm:$0xff]
    %v52 = vld [vmem:[%s1 + $0xe8] sm:$0xff]
    %v53 = vld [vmem:[%s1 + $0xf0] sm:$0xff]
    %v54 = vld [vmem:[%s1 + $0xf8] sm:$0xff]
    %v55 = vld [vmem:[%s1 + $0x100] sm:$0xff]
    %v56 = vld [vmem:[%s1 + $0x108] sm:$0xff]
    %v57 = vld [vmem:[%s1 + $0x110] sm:$0xff]
    %v58 = vld [vmem:[%s1 + $0x118] sm:$0xff]
    %v59 = vld [vmem:[%s1 + $0x120] sm:$0xff]
    %v60 = vld [vmem:[%s1 + $0x128] sm:$0xff]
    %v61 = vld [vmem:[%s1 + $0x130] sm:$0xff]
    %v62 = vld [vmem:[%s1 + $0x138] sm:$0xff]
    %v63 = vld [vmem:[%s1 + $0x140] sm:$0xff]
    %v64 = vld [vmem:[%s1 + $0x148] sm:$0xff]
    %v65 = vld [vmem:[%s1 + $0x150] sm:$0xff]
    %v66 = vld [vmem:[%s1 + $0x158] sm:$0xff]
    %v67 = vld [vmem:[%s1 + $0x160] sm:$0xff]
    %v68 = vld [vmem:[%s1 + $0x168] sm:$0xff]
    %v69 = vld [vmem:[%s1 + $0x170] sm:$0xff]
    %v70 = vld [vmem:[%s1 + $0x178] sm:$0xff]
    %v71 = vld [vmem:[%s1 + $0x180] sm:$0xff]
    %v72 = vld [vmem:[%s1 + $0x188] sm:$0xff]
    %v73 = vld [vmem:[%s1 + $0x190] sm:$0xff]
    %v74 = vld [vmem:[%s1 + $0x198] sm:$0xff]
    %v75 = vld [vmem:[%s1 + $0x1a0] sm:$0xff]
    %v76 = vld [vmem:[%s1 + $0x1a8] sm:$0xff]
    %v77 = vld [vmem:[%s1 + $0x1b0] sm:$0xff]
    %v78 = vld [vmem:[%s1 + $0x1b8] sm:$0xff]
    %v79 = vld [vmem:[%s1 + $0x1c0] sm:$0xff]
    %v80 = vld [vmem:[%s1 + $0x1c8] sm:$0xff]
    %v81 = vld [vmem:[%s1 + $0x1d0] sm:$0xff]
    %v82 = vld [vmem:[%s1 + $0x1d8] sm:$0xff]
    %v83 = vld [vmem:[%s1 + $0x1e0] sm:$0xff]
    %v84 = vld [vmem:[%s1 + $0x1e8] sm:$0xff]
    %v85 = vld [vmem:[%s1 + $0x1f0] sm:$0xff]
    %v86 = vld [vmem:[%s1 + $0x1f8] sm:$0xff]
    %v87 = vld [vmem:[%s1 + $0x200] sm:$0xff]
    %v88 = vld [vmem:[%s1 + $0x208] sm:$0xff]
    %v89 = vld [vmem:[%s1 + $0x210] sm:$0xff]
    %v90 = vld [vmem:[%s1 + $0x218] sm:$0xff]
    %v91 = vld [vmem:[%s1 + $0x220] sm:$0xff]
    %v92 = vld [vmem:[%s1 + $0x228] sm:$0xff]
    %v93 = vld [vmem:[%s1 + $0x230] sm:$0xff]
    %v94 = vld [vmem:[%s1 + $0x238] sm:$0xff]
    %v95 = vld [vmem:[%s1 + $0x240] sm:$0xff]
    %v96 = vld [vmem:[%s1 + $0x248] sm:$0xff]
    %v97 = vld [vmem:[%s1 + $0x250] sm:$0xff]
    %v98 = vld [vmem:[%s1 + $0x258] sm:$0xff]
    %v99 = vld [vmem:[%s1 + $0x260] sm:$0xff]
    %v100 = vld [vmem:[%s1 + $0x268] sm:$0xff]
    %v101 = vld [vmem:[%s1 + $0x270] sm:$0xff]
    %v102 = vld [vmem:[%s1 + $0x278] sm:$0xff]
    %v103 = vld [vmem:[%s1 + $0x280] sm:$0xff]
    %v104 = vld [vmem:[%s1 + $0x288] sm:$0xff]
    %v105 = vld [vmem:[%s1 + $0x290] sm:$0xff]
    %v106 = vld [vmem:[%s1 + $0x298] sm:$0xff]
    %v107 = vld [vmem:[%s1 + $0x2a0] sm:$0xff]
    %v108 = vld [vmem:[%s1 + $0x2a8] sm:$0xff]
    %v109 = vld [vmem:[%s1 + $0x2b0] sm:$0xff]
    %v110 = vld [vmem:[%s1 + $0x2b8] sm:$0xff]
    %v111 = vld [vmem:[%s1 + $0x2c0] sm:$0xff]
    %v112 = vld [vmem:[%s1 + $0x2c8] sm:$0xff]
    %v113 = vld [vmem:[%s1 + $0x2d0] sm:$0xff]
    %v114 = vld [vmem:[%s1 + $0x2d8] sm:$0xff]
    %v115 = vld [vmem:[%s1 + $0x2e0] sm:$0xff]
    %v116 = vld [vmem:[%s1 + $0x2e8] sm:$0xff]
    %v117 = vld [vmem:[%s1 + $0x2f0] sm:$0xff]
    %v118 = vld [vmem:[%s1 + $0x2f8] sm:$0xff]
    %v119 = vld [vmem:[%s1 + $0x300] sm:$0xff]
    %v120 = vld [vmem:[%s1 + $0x308] sm:$0xff]
    %v121 = vld [vmem:[%s1 + $0x310] sm:$0xff]
    %v122 = vld [vmem:[%s1 + $0x318] sm:$0xff]
    %v123 = vld [vmem:[%s1 + $0x320] sm:$0xff]
    %v124 = vld [vmem:[%s1 + $0x328] sm:$0xff]
    %v125 = vld [vmem:[%s1 + $0x330] sm:$0xff]
    %v126 = vld [vmem:[%s1 + $0x338] sm:$0xff]
    %v127 = vld [vmem:[%s1 + $0x340] sm:$0xff]
    %v128 = vld [vmem:[%s1 + $0x348] sm:$0xff]
    %v129 = vld [vmem:[%s1 + $0x350] sm:$0xff]
    %v130 = vld [vmem:[%s1 + $0x358] sm:$0xff]
    %v131 = vld [vmem:[%s1 + $0x360] sm:$0xff]
    %v132 = vld [vmem:[%s1 + $0x368] sm:$0xff]
    %v133 = vld [vmem:[%s1 + $0x370] sm:$0xff]
    %v134 = vld [vmem:[%s1 + $0x378] sm:$0xff]
    %v135 = vld [vmem:[%s1 + $0x380] sm:$0xff]
    %v136 = vld [vmem:[%s1 + $0x388] sm:$0xff]
    %v137 = vld [vmem:[%s1 + $0x390] sm:$0xff]
    %v138 = vld [vmem:[%s1 + $0x398] sm:$0xff]
    %v139 = vld [vmem:[%s1 + $0x3a0] sm:$0xff]
    %v140 = vld [vmem:[%s1 + $0x3a8] sm:$0xff]
    %v141 = vld [vmem:[%s1 + $0x3b0] sm:$0xff]
    %v142 = vld [vmem:[%s1 + $0x3b8] sm:$0xff]
    %v143 = vld [vmem:[%s1 + $0x3c0] sm:$0xff]
    %v144 = vld [vmem:[%s1 + $0x3c8] sm:$0xff]
    %v145 = vld [vmem:[%s1 + $0x3d0] sm:$0xff]
    %v146 = vld [vmem:[%s1 + $0x3d8] sm:$0xff]
    %v147 = vld [vmem:[%s1 + $0x3e0] sm:$0xff]
    %v148 = vld [vmem:[%s1 + $0x3e8] sm:$0xff]
    %v149 = vld [vmem:[%s1 + $0x3f0] sm:$0xff]
    %v150 = vld [vmem:[%s1 + $0x3f8] sm:$0xff]
    %v151 = vld [vmem:[%s1 + $0x400] sm:$0xff]
    %v152 = vld [vmem:[%s1 + $0x408] sm:$0xff]
    %v153 = vld [vmem:[%s1 + $0x410] sm:$0xff]
    %v154 = vld [vmem:[%s1 + $0x418] sm:$0xff]
    %v155 = vld [vmem:[%s1 + $0x420] sm:$0xff]
    %v156 = vld [vmem:[%s1 + $0x428] sm:$0xff]
    %v157 = vld [vmem:[%s1 + $0x430] sm:$0xff]
    %v158 = vld [vmem:[%s1 + $0x438] sm:$0xff]
    %v159 = vld [vmem:[%s1 + $0x440] sm:$0xff]
    %v160 = vld [vmem:[%s1 + $0x448] sm:$0xff]
    %v161 = vld [vmem:[%s1 + $0x450] sm:$0xff]
    %v162 = vld [vmem:[%s1 + $0x458] sm:$0xff]
    %v163 = vld [vmem:[%s1 + $0x460] sm:$0xff]
    %v164 = vld [vmem:[%s1 + $0x468] sm:$0xff]
    %v165 = vld [vmem:[%s1 + $0x470] sm:$0xff]
    %v166 = vld [vmem:[%s1 + $0x478] sm:$0xff]
    %v167 = vld [vmem:[%s2] sm:$0xf]
    %v169 = vlaneseq
    %v170 = vshrl.u32 %v169, 7
    %v171 = vsub.s32 0, %v170
    %v172 = vrot.slane %v167, %v171
    %v173 = vlaneseq
    %v174 = vshrl.u32 %v173, 7
    %v175 = vsub.s32 1, %v174
    %v176 = vrot.slane %v167, %v175
    %v177 = vlaneseq
    %v178 = vshrl.u32 %v177, 7
    %v179 = vsub.s32 2, %v178
    %v180 = vrot.slane %v167, %v179
    %v181 = vlaneseq
    %v182 = vshrl.u32 %v181, 7
    %v183 = vsub.s32 3, %v182
    %v184 = vrot.slane %v167, %v183
    %v190 = vcombine.high %v22, %v22
    %v192 = vunpack.c.l.s4 1966171168
    %v193 = vunpack.c.0.s8 %v192
    %v194 = vlaneseq
    %v195 = vshrl.u32 %v194, 7
    %v196 = vsub.s32 %v193, %v195
    %v197 = vrot.slane %v22, %v196
    %v199 = vunpack.c.l.s4 1966171168
    %v200 = vunpack.c.0.s8 %v199
    %v201 = vlaneseq
    %v202 = vshrl.u32 %v201, 7
    %v203 = vsub.s32 %v200, %v202
    %v204 = vrot.slane %v190, %v203
    %v205 = vcombine.high %v197, %v197
    %v207 = vunpack.c.l.s4 1966171168
    %v208 = vunpack.c.0.s8 %v207
    %v209 = vlaneseq
    %v210 = vshrl.u32 %v209, 7
    %v211 = vsub.s32 %v208, %v210
    %v212 = vrot.slane %v197, %v211
    %v214 = vunpack.c.l.s4 1966171168
    %v215 = vunpack.c.0.s8 %v214
    %v216 = vlaneseq
    %v217 = vshrl.u32 %v216, 7
    %v218 = vsub.s32 %v215, %v217
    %v219 = vrot.slane %v204, %v218
    %v221 = vunpack.c.l.s4 1966171168
    %v222 = vunpack.c.0.s8 %v221
    %v223 = vlaneseq
    %v224 = vshrl.u32 %v223, 7
    %v225 = vsub.s32 %v222, %v224
    %v226 = vrot.slane %v205, %v225
    %v227 = vcombine.high %v212, %v212
    %v228 = vcombine.high %v226, %v226
    %v377 = vunpack.c.l.b16 %v23
    %v378 = vunpack.c.h.b16 %v23
    %v379 = vunpack.c.l.b16 %v24
    %v380 = vunpack.c.h.b16 %v24
    %v381 = vunpack.c.l.b16 %v25
    %v382 = vunpack.c.h.b16 %v25
    %v383 = vunpack.c.l.b16 %v26
    %v384 = vunpack.c.h.b16 %v26
    %v385 = vunpack.c.l.b16 %v27
    %v386 = vunpack.c.h.b16 %v27
    %v387 = vunpack.c.l.b16 %v28
    %v388 = vunpack.c.h.b16 %v28
    %v389 = vunpack.c.l.b16 %v29
    %v390 = vunpack.c.h.b16 %v29
    %v391 = vunpack.c.l.b16 %v30
    %v392 = vunpack.c.h.b16 %v30
    %v393 = vunpack.c.l.b16 %v31
    %v394 = vunpack.c.h.b16 %v31
    %v395 = vunpack.c.l.b16 %v32
    %v396 = vunpack.c.h.b16 %v32
    %v397 = vunpack.c.l.b16 %v33
    %v398 = vunpack.c.h.b16 %v33
    %v399 = vunpack.c.l.b16 %v34
    %v400 = vunpack.c.h.b16 %v34
    %v401 = vunpack.c.l.b16 %v35
    %v402 = vunpack.c.h.b16 %v35
    %v403 = vunpack.c.l.b16 %v36
    %v404 = vunpack.c.h.b16 %v36
    %v405 = vunpack.c.l.b16 %v37
    %v406 = vunpack.c.h.b16 %v37
    %v407 = vunpack.c.l.b16 %v38
    %v408 = vunpack.c.h.b16 %v38
    %v409 = vunpack.c.l.b16 %v39
    %v410 = vunpack.c.h.b16 %v39
    %v411 = vunpack.c.l.b16 %v40
    %v412 = vunpack.c.h.b16 %v40
    %v413 = vunpack.c.l.b16 %v41
    %v414 = vunpack.c.h.b16 %v41
    %v415 = vunpack.c.l.b16 %v42
    %v416 = vunpack.c.h.b16 %v42
    %v417 = vunpack.c.l.b16 %v43
    %v418 = vunpack.c.h.b16 %v43
    %v419 = vunpack.c.l.b16 %v44
    %v420 = vunpack.c.h.b16 %v44
    %v421 = vunpack.c.l.b16 %v45
    %v422 = vunpack.c.h.b16 %v45
    %v423 = vunpack.c.l.b16 %v46
    %v424 = vunpack.c.h.b16 %v46
    %v425 = vunpack.c.l.b16 %v47
    %v426 = vunpack.c.h.b16 %v47
    %v427 = vunpack.c.l.b16 %v48
    %v428 = vunpack.c.h.b16 %v48
    %v429 = vunpack.c.l.b16 %v49
    %v430 = vunpack.c.h.b16 %v49
    %v431 = vunpack.c.l.b16 %v50
    %v432 = vunpack.c.h.b16 %v50
    %v433 = vunpack.c.l.b16 %v51
    %v434 = vunpack.c.h.b16 %v51
    %v435 = vunpack.c.l.b16 %v52
    %v436 = vunpack.c.h.b16 %v52
    %v437 = vunpack.c.l.b16 %v53
    %v438 = vunpack.c.h.b16 %v53
    %v439 = vunpack.c.l.b16 %v54
    %v440 = vunpack.c.h.b16 %v54
    %v441 = vunpack.c.l.b16 %v55
    %v442 = vunpack.c.h.b16 %v55
    %v443 = vunpack.c.l.b16 %v56
    %v444 = vunpack.c.h.b16 %v56
    %v445 = vunpack.c.l.b16 %v57
    %v446 = vunpack.c.h.b16 %v57
    %v447 = vunpack.c.l.b16 %v58
    %v448 = vunpack.c.h.b16 %v58
    %v449 = vunpack.c.l.b16 %v59
    %v450 = vunpack.c.h.b16 %v59
    %v451 = vunpack.c.l.b16 %v60
    %v452 = vunpack.c.h.b16 %v60
    %v453 = vunpack.c.l.b16 %v61
    %v454 = vunpack.c.h.b16 %v61
    %v455 = vunpack.c.l.b16 %v62
    %v456 = vunpack.c.h.b16 %v62
    %v457 = vunpack.c.l.b16 %v63
    %v458 = vunpack.c.h.b16 %v63
    %v459 = vunpack.c.l.b16 %v64
    %v460 = vunpack.c.h.b16 %v64
    %v461 = vunpack.c.l.b16 %v65
    %v462 = vunpack.c.h.b16 %v65
    %v463 = vunpack.c.l.b16 %v66
    %v464 = vunpack.c.h.b16 %v66
    %v465 = vunpack.c.l.b16 %v67
    %v466 = vunpack.c.h.b16 %v67
    %v467 = vunpack.c.l.b16 %v68
    %v468 = vunpack.c.h.b16 %v68
    %v469 = vunpack.c.l.b16 %v69
    %v470 = vunpack.c.h.b16 %v69
    %v471 = vunpack.c.l.b16 %v70
    %v472 = vunpack.c.h.b16 %v70
    %v473 = vunpack.c.l.b16 %v71
    %v474 = vunpack.c.h.b16 %v71
    %v475 = vunpack.c.l.b16 %v72
    %v476 = vunpack.c.h.b16 %v72
    %v477 = vunpack.c.l.b16 %v73
    %v478 = vunpack.c.h.b16 %v73
    %v479 = vunpack.c.l.b16 %v74
    %v480 = vunpack.c.h.b16 %v74
    %v481 = vunpack.c.l.b16 %v75
    %v482 = vunpack.c.h.b16 %v75
    %v483 = vunpack.c.l.b16 %v76
    %v484 = vunpack.c.h.b16 %v76
    %v485 = vunpack.c.l.b16 %v77
    %v486 = vunpack.c.h.b16 %v77
    %v487 = vunpack.c.l.b16 %v78
    %v488 = vunpack.c.h.b16 %v78
    %v489 = vunpack.c.l.b16 %v79
    %v490 = vunpack.c.h.b16 %v79
    %v491 = vunpack.c.l.b16 %v80
    %v492 = vunpack.c.h.b16 %v80
    %v493 = vunpack.c.l.b16 %v81
    %v494 = vunpack.c.h.b16 %v81
    %v495 = vunpack.c.l.b16 %v82
    %v496 = vunpack.c.h.b16 %v82
    %v497 = vunpack.c.l.b16 %v83
    %v498 = vunpack.c.h.b16 %v83
    %v499 = vunpack.c.l.b16 %v84
    %v500 = vunpack.c.h.b16 %v84
    %v501 = vunpack.c.l.b16 %v85
    %v502 = vunpack.c.h.b16 %v85
    %v503 = vunpack.c.l.b16 %v86
    %v504 = vunpack.c.h.b16 %v86
    %v505 = vunpack.c.l.b16 %v87
    %v506 = vunpack.c.h.b16 %v87
    %v507 = vunpack.c.l.b16 %v88
    %v508 = vunpack.c.h.b16 %v88
    %v509 = vunpack.c.l.b16 %v89
    %v510 = vunpack.c.h.b16 %v89
    %v511 = vunpack.c.l.b16 %v90
    %v512 = vunpack.c.h.b16 %v90
    %v513 = vunpack.c.l.b16 %v91
    %v514 = vunpack.c.h.b16 %v91
    %v515 = vunpack.c.l.b16 %v92
    %v516 = vunpack.c.h.b16 %v92
    %v517 = vunpack.c.l.b16 %v93
    %v518 = vunpack.c.h.b16 %v93
    %v519 = vunpack.c.l.b16 %v94
    %v520 = vunpack.c.h.b16 %v94
    %v521 = vunpack.c.l.b16 %v95
    %v522 = vunpack.c.h.b16 %v95
    %v523 = vunpack.c.l.b16 %v96
    %v524 = vunpack.c.h.b16 %v96
    %v525 = vunpack.c.l.b16 %v97
    %v526 = vunpack.c.h.b16 %v97
    %v527 = vunpack.c.l.b16 %v98
    %v528 = vunpack.c.h.b16 %v98
    %v529 = vunpack.c.l.b16 %v99
    %v530 = vunpack.c.h.b16 %v99
    %v531 = vunpack.c.l.b16 %v100
    %v532 = vunpack.c.h.b16 %v100
    %v533 = vunpack.c.l.b16 %v101
    %v534 = vunpack.c.h.b16 %v101
    %v535 = vunpack.c.l.b16 %v102
    %v536 = vunpack.c.h.b16 %v102
    %v537 = vunpack.c.l.b16 %v103
    %v538 = vunpack.c.h.b16 %v103
    %v539 = vunpack.c.l.b16 %v104
    %v540 = vunpack.c.h.b16 %v104
    %v541 = vunpack.c.l.b16 %v105
    %v542 = vunpack.c.h.b16 %v105
    %v543 = vunpack.c.l.b16 %v106
    %v544 = vunpack.c.h.b16 %v106
    %v545 = vunpack.c.l.b16 %v107
    %v546 = vunpack.c.h.b16 %v107
    %v547 = vunpack.c.l.b16 %v108
    %v548 = vunpack.c.h.b16 %v108
    %v549 = vunpack.c.l.b16 %v109
    %v550 = vunpack.c.h.b16 %v109
    %v551 = vunpack.c.l.b16 %v110
    %v552 = vunpack.c.h.b16 %v110
    %v553 = vunpack.c.l.b16 %v111
    %v554 = vunpack.c.h.b16 %v111
    %v555 = vunpack.c.l.b16 %v112
    %v556 = vunpack.c.h.b16 %v112
    %v557 = vunpack.c.l.b16 %v113
    %v558 = vunpack.c.h.b16 %v113
    %v559 = vunpack.c.l.b16 %v114
    %v560 = vunpack.c.h.b16 %v114
    %v561 = vunpack.c.l.b16 %v115
    %v562 = vunpack.c.h.b16 %v115
    %v563 = vunpack.c.l.b16 %v116
    %v564 = vunpack.c.h.b16 %v116
    %v565 = vunpack.c.l.b16 %v117
    %v566 = vunpack.c.h.b16 %v117
    %v567 = vunpack.c.l.b16 %v118
    %v568 = vunpack.c.h.b16 %v118
    %v569 = vunpack.c.l.b16 %v119
    %v570 = vunpack.c.h.b16 %v119
    %v571 = vunpack.c.l.b16 %v120
    %v572 = vunpack.c.h.b16 %v120
    %v573 = vunpack.c.l.b16 %v121
    %v574 = vunpack.c.h.b16 %v121
    %v575 = vunpack.c.l.b16 %v122
    %v576 = vunpack.c.h.b16 %v122
    %v577 = vunpack.c.l.b16 %v123
    %v578 = vunpack.c.h.b16 %v123
    %v579 = vunpack.c.l.b16 %v124
    %v580 = vunpack.c.h.b16 %v124
    %v581 = vunpack.c.l.b16 %v125
    %v582 = vunpack.c.h.b16 %v125
    %v583 = vunpack.c.l.b16 %v126
    %v584 = vunpack.c.h.b16 %v126
    %v585 = vunpack.c.l.b16 %v127
    %v586 = vunpack.c.h.b16 %v127
    %v587 = vunpack.c.l.b16 %v128
    %v588 = vunpack.c.h.b16 %v128
    %v589 = vunpack.c.l.b16 %v129
    %v590 = vunpack.c.h.b16 %v129
    %v591 = vunpack.c.l.b16 %v130
    %v592 = vunpack.c.h.b16 %v130
    %v593 = vunpack.c.l.b16 %v131
    %v594 = vunpack.c.h.b16 %v131
    %v595 = vunpack.c.l.b16 %v132
    %v596 = vunpack.c.h.b16 %v132
    %v597 = vunpack.c.l.b16 %v133
    %v598 = vunpack.c.h.b16 %v133
    %v599 = vunpack.c.l.b16 %v134
    %v600 = vunpack.c.h.b16 %v134
    %v601 = vunpack.c.l.b16 %v135
    %v602 = vunpack.c.h.b16 %v135
    %v603 = vunpack.c.l.b16 %v136
    %v604 = vunpack.c.h.b16 %v136
    %v605 = vunpack.c.l.b16 %v137
    %v606 = vunpack.c.h.b16 %v137
    %v607 = vunpack.c.l.b16 %v138
    %v608 = vunpack.c.h.b16 %v138
    %v609 = vunpack.c.l.b16 %v139
    %v610 = vunpack.c.h.b16 %v139
    %v611 = vunpack.c.l.b16 %v140
    %v612 = vunpack.c.h.b16 %v140
    %v613 = vunpack.c.l.b16 %v141
    %v614 = vunpack.c.h.b16 %v141
    %v615 = vunpack.c.l.b16 %v142
    %v616 = vunpack.c.h.b16 %v142
    %v617 = vunpack.c.l.b16 %v143
    %v618 = vunpack.c.h.b16 %v143
    %v619 = vunpack.c.l.b16 %v144
    %v620 = vunpack.c.h.b16 %v144
    %v621 = vunpack.c.l.b16 %v145
    %v622 = vunpack.c.h.b16 %v145
    %v623 = vunpack.c.l.b16 %v146
    %v624 = vunpack.c.h.b16 %v146
    %v625 = vunpack.c.l.b16 %v147
    %v626 = vunpack.c.h.b16 %v147
    %v627 = vunpack.c.l.b16 %v148
    %v628 = vunpack.c.h.b16 %v148
    %v629 = vunpack.c.l.b16 %v149
    %v630 = vunpack.c.h.b16 %v149
    %v631 = vunpack.c.l.b16 %v150
    %v632 = vunpack.c.h.b16 %v150
    %v633 = vunpack.c.l.b16 %v151
    %v634 = vunpack.c.h.b16 %v151
    %v635 = vunpack.c.l.b16 %v152
    %v636 = vunpack.c.h.b16 %v152
    %v637 = vunpack.c.l.b16 %v153
    %v638 = vunpack.c.h.b16 %v153
    %v639 = vunpack.c.l.b16 %v154
    %v640 = vunpack.c.h.b16 %v154
    %v641 = vunpack.c.l.b16 %v155
    %v642 = vunpack.c.h.b16 %v155
    %v643 = vunpack.c.l.b16 %v156
    %v644 = vunpack.c.h.b16 %v156
    %v645 = vunpack.c.l.b16 %v157
    %v646 = vunpack.c.h.b16 %v157
    %v647 = vunpack.c.l.b16 %v158
    %v648 = vunpack.c.h.b16 %v158
    %v649 = vunpack.c.l.b16 %v159
    %v650 = vunpack.c.h.b16 %v159
    %v651 = vunpack.c.l.b16 %v160
    %v652 = vunpack.c.h.b16 %v160
    %v653 = vunpack.c.l.b16 %v161
    %v654 = vunpack.c.h.b16 %v161
    %v655 = vunpack.c.l.b16 %v162
    %v656 = vunpack.c.h.b16 %v162
    %v657 = vunpack.c.l.b16 %v163
    %v658 = vunpack.c.h.b16 %v163
    %v659 = vunpack.c.l.b16 %v164
    %v660 = vunpack.c.h.b16 %v164
    %v661 = vunpack.c.l.b16 %v165
    %v662 = vunpack.c.h.b16 %v165
    %v663 = vunpack.c.l.b16 %v166
    %v664 = vunpack.c.h.b16 %v166
    %v665 = vpack.c.b16 %v381, %v377
    %v666 = vpack.c.b16 %v382, %v378
    %v667 = vpack.c.b16 %v383, %v379
    %v668 = vpack.c.b16 %v384, %v380
    %v669 = vpack.c.b16 %v389, %v385
    %v670 = vpack.c.b16 %v390, %v386
    %v671 = vpack.c.b16 %v391, %v387
    %v672 = vpack.c.b16 %v392, %v388
    %v673 = vpack.c.b16 %v397, %v393
    %v674 = vpack.c.b16 %v398, %v394
    %v675 = vpack.c.b16 %v399, %v395
    %v676 = vpack.c.b16 %v400, %v396
    %v677 = vpack.c.b16 %v405, %v401
    %v678 = vpack.c.b16 %v406, %v402
    %v679 = vpack.c.b16 %v407, %v403
    %v680 = vpack.c.b16 %v408, %v404
    %v681 = vpack.c.b16 %v413, %v409
    %v682 = vpack.c.b16 %v414, %v410
    %v683 = vpack.c.b16 %v415, %v411
    %v684 = vpack.c.b16 %v416, %v412
    %v685 = vpack.c.b16 %v421, %v417
    %v686 = vpack.c.b16 %v422, %v418
    %v687 = vpack.c.b16 %v423, %v419
    %v688 = vpack.c.b16 %v424, %v420
    %v689 = vpack.c.b16 %v429, %v425
    %v690 = vpack.c.b16 %v430, %v426
    %v691 = vpack.c.b16 %v431, %v427
    %v692 = vpack.c.b16 %v432, %v428
    %v693 = vpack.c.b16 %v437, %v433
    %v694 = vpack.c.b16 %v438, %v434
    %v695 = vpack.c.b16 %v439, %v435
    %v696 = vpack.c.b16 %v440, %v436
    %v697 = vpack.c.b16 %v445, %v441
    %v698 = vpack.c.b16 %v446, %v442
    %v699 = vpack.c.b16 %v447, %v443
    %v700 = vpack.c.b16 %v448, %v444
    %v701 = vpack.c.b16 %v453, %v449
    %v702 = vpack.c.b16 %v454, %v450
    %v703 = vpack.c.b16 %v455, %v451
    %v704 = vpack.c.b16 %v456, %v452
    %v705 = vpack.c.b16 %v461, %v457
    %v706 = vpack.c.b16 %v462, %v458
    %v707 = vpack.c.b16 %v463, %v459
    %v708 = vpack.c.b16 %v464, %v460
    %v709 = vpack.c.b16 %v469, %v465
    %v710 = vpack.c.b16 %v470, %v466
    %v711 = vpack.c.b16 %v471, %v467
    %v712 = vpack.c.b16 %v472, %v468
    %v713 = vpack.c.b16 %v477, %v473
    %v714 = vpack.c.b16 %v478, %v474
    %v715 = vpack.c.b16 %v479, %v475
    %v716 = vpack.c.b16 %v480, %v476
    %v717 = vpack.c.b16 %v485, %v481
    %v718 = vpack.c.b16 %v486, %v482
    %v719 = vpack.c.b16 %v487, %v483
    %v720 = vpack.c.b16 %v488, %v484
    %v721 = vpack.c.b16 %v493, %v489
    %v722 = vpack.c.b16 %v494, %v490
    %v723 = vpack.c.b16 %v495, %v491
    %v724 = vpack.c.b16 %v496, %v492
    %v725 = vpack.c.b16 %v501, %v497
    %v726 = vpack.c.b16 %v502, %v498
    %v727 = vpack.c.b16 %v503, %v499
    %v728 = vpack.c.b16 %v504, %v500
    %v729 = vpack.c.b16 %v509, %v505
    %v730 = vpack.c.b16 %v510, %v506
    %v731 = vpack.c.b16 %v511, %v507
    %v732 = vpack.c.b16 %v512, %v508
    %v733 = vpack.c.b16 %v517, %v513
    %v734 = vpack.c.b16 %v518, %v514
    %v735 = vpack.c.b16 %v519, %v515
    %v736 = vpack.c.b16 %v520, %v516
    %v737 = vpack.c.b16 %v525, %v521
    %v738 = vpack.c.b16 %v526, %v522
    %v739 = vpack.c.b16 %v527, %v523
    %v740 = vpack.c.b16 %v528, %v524
    %v741 = vpack.c.b16 %v533, %v529
    %v742 = vpack.c.b16 %v534, %v530
    %v743 = vpack.c.b16 %v535, %v531
    %v744 = vpack.c.b16 %v536, %v532
    %v745 = vpack.c.b16 %v541, %v537
    %v746 = vpack.c.b16 %v542, %v538
    %v747 = vpack.c.b16 %v543, %v539
    %v748 = vpack.c.b16 %v544, %v540
    %v749 = vpack.c.b16 %v549, %v545
    %v750 = vpack.c.b16 %v550, %v546
    %v751 = vpack.c.b16 %v551, %v547
    %v752 = vpack.c.b16 %v552, %v548
    %v753 = vpack.c.b16 %v557, %v553
    %v754 = vpack.c.b16 %v558, %v554
    %v755 = vpack.c.b16 %v559, %v555
    %v756 = vpack.c.b16 %v560, %v556
    %v757 = vpack.c.b16 %v565, %v561
    %v758 = vpack.c.b16 %v566, %v562
    %v759 = vpack.c.b16 %v567, %v563
    %v760 = vpack.c.b16 %v568, %v564
    %v761 = vpack.c.b16 %v573, %v569
    %v762 = vpack.c.b16 %v574, %v570
    %v763 = vpack.c.b16 %v575, %v571
    %v764 = vpack.c.b16 %v576, %v572
    %v765 = vpack.c.b16 %v581, %v577
    %v766 = vpack.c.b16 %v582, %v578
    %v767 = vpack.c.b16 %v583, %v579
    %v768 = vpack.c.b16 %v584, %v580
    %v769 = vpack.c.b16 %v589, %v585
    %v770 = vpack.c.b16 %v590, %v586
    %v771 = vpack.c.b16 %v591, %v587
    %v772 = vpack.c.b16 %v592, %v588
    %v773 = vpack.c.b16 %v597, %v593
    %v774 = vpack.c.b16 %v598, %v594
    %v775 = vpack.c.b16 %v599, %v595
    %v776 = vpack.c.b16 %v600, %v596
    %v777 = vpack.c.b16 %v605, %v601
    %v778 = vpack.c.b16 %v606, %v602
    %v779 = vpack.c.b16 %v607, %v603
    %v780 = vpack.c.b16 %v608, %v604
    %v781 = vpack.c.b16 %v613, %v609
    %v782 = vpack.c.b16 %v614, %v610
    %v783 = vpack.c.b16 %v615, %v611
    %v784 = vpack.c.b16 %v616, %v612
    %v785 = vpack.c.b16 %v621, %v617
    %v786 = vpack.c.b16 %v622, %v618
    %v787 = vpack.c.b16 %v623, %v619
    %v788 = vpack.c.b16 %v624, %v620
    %v789 = vpack.c.b16 %v629, %v625
    %v790 = vpack.c.b16 %v630, %v626
    %v791 = vpack.c.b16 %v631, %v627
    %v792 = vpack.c.b16 %v632, %v628
    %v793 = vpack.c.b16 %v637, %v633
    %v794 = vpack.c.b16 %v638, %v634
    %v795 = vpack.c.b16 %v639, %v635
    %v796 = vpack.c.b16 %v640, %v636
    %v797 = vpack.c.b16 %v645, %v641
    %v798 = vpack.c.b16 %v646, %v642
    %v799 = vpack.c.b16 %v647, %v643
    %v800 = vpack.c.b16 %v648, %v644
    %v801 = vpack.c.b16 %v653, %v649
    %v802 = vpack.c.b16 %v654, %v650
    %v803 = vpack.c.b16 %v655, %v651
    %v804 = vpack.c.b16 %v656, %v652
    %v805 = vpack.c.b16 %v661, %v657
    %v806 = vpack.c.b16 %v662, %v658
    %v807 = vpack.c.b16 %v663, %v659
    %v808 = vpack.c.b16 %v664, %v660
    %vm953 = vcmask 523264
    %v955 = vsel %vm953, %v219, 0
    %957 = vmatprep.subr.bf16.mxu0 %v666
    %958 = vmatpush1.bf16.msra.mxu0 %v665
    %959 = vmatprep.subr.bf16.mxu0 %v670
    %960 = vmatpush1.bf16.msra.mxu0 %v669
    %961 = vmatprep.subr.bf16.mxu0 %v674
    %962 = vmatpush1.bf16.msra.mxu0 %v673
    %963 = vmatprep.subr.bf16.mxu0 %v678
    %964 = vmatpush1.bf16.msra.mxu0 %v677
    %965 = vmatprep.subr.bf16.mxu0 %v682
    %966 = vmatpush1.bf16.msra.mxu0 %v681
    %967 = vmatprep.subr.bf16.mxu0 %v686
    %968 = vmatpush1.bf16.msra.mxu0 %v685
    %969 = vmatprep.subr.bf16.mxu0 %v690
    %970 = vmatpush1.bf16.msra.mxu0 %v689
    %971 = vmatprep.subr.bf16.mxu0 %v694
    %972 = vmatpush1.bf16.msra.mxu0 %v693
    %973 = vmatprep.subr.bf16.mxu0 %v698
    %974 = vmatpush1.bf16.msra.mxu0 %v697
    %975 = vmatprep.subr.bf16.mxu0 %v702
    %976 = vmatpush1.bf16.msra.mxu0 %v701
    %977 = vmatprep.subr.bf16.mxu0 %v706
    %978 = vmatpush1.bf16.msra.mxu0 %v705
    %979 = vmatprep.subr.bf16.mxu0 %v710
    %980 = vmatpush1.bf16.msra.mxu0 %v709
    %981 = vmatprep.subr.bf16.mxu0 %v714
    %982 = vmatpush1.bf16.msra.mxu0 %v713
    %983 = vmatprep.subr.bf16.mxu0 %v718
    %984 = vmatpush1.bf16.msra.mxu0 %v717
    %985 = vmatprep.subr.bf16.mxu0 %v722
    %986 = vmatpush1.bf16.msra.mxu0 %v721
    %987 = vmatprep.subr.bf16.mxu0 %v726
    %988 = vmatpush1.bf16.msra.mxu0 %v725
    %989 = vmatprep.mubr.bf16.mxu0 %v226
    %990 = vmatmul.mubr.bf16.gmra.mrb[0].mxu0 %v212
    %v991 = vpop.f32.mrb[0].mxu0
    %v992 = vadd.f32 %v172, %v991
    %v993 = vpop.f32.mrb[0].mxu0
    %v994 = vadd.f32 %v176, %v993
    %v995 = vpop.f32.mrb[0].mxu0
    %v996 = vpop.f32.mrb[0].mxu0
    %997 = vdwg.mxu0
    %998 = vmatprep.subr.bf16.mxu0 %v730
    %999 = vmatpush1.bf16.msra.mxu0 %v729
    %1000 = vmatprep.subr.bf16.mxu0 %v734
    %1001 = vmatpush1.bf16.msra.mxu0 %v733
    %1002 = vmatprep.subr.bf16.mxu0 %v738
    %1003 = vmatpush1.bf16.msra.mxu0 %v737
    %1004 = vmatprep.subr.bf16.mxu0 %v742
    %1005 = vmatpush1.bf16.msra.mxu0 %v741
    %1006 = vmatprep.subr.bf16.mxu0 %v746
    %1007 = vmatpush1.bf16.msra.mxu0 %v745
    %1008 = vmatprep.subr.bf16.mxu0 %v750
    %1009 = vmatpush1.bf16.msra.mxu0 %v749
    %1010 = vmatprep.subr.bf16.mxu0 %v754
    %1011 = vmatpush1.bf16.msra.mxu0 %v753
    %1012 = vmatprep.subr.bf16.mxu0 %v758
    %1013 = vmatpush1.bf16.msra.mxu0 %v757
    %1014 = vmatprep.subr.bf16.mxu0 %v762
    %1015 = vmatpush1.bf16.msra.mxu0 %v761
    %1016 = vmatprep.subr.bf16.mxu0 %v766
    %1017 = vmatpush1.bf16.msra.mxu0 %v765
    %1018 = vmatprep.subr.bf16.mxu0 %v770
    %1019 = vmatpush1.bf16.msra.mxu0 %v769
    %1020 = vmatprep.subr.bf16.mxu0 %v774
    %1021 = vmatpush1.bf16.msra.mxu0 %v773
    %1022 = vmatprep.subr.bf16.mxu0 %v778
    %1023 = vmatpush1.bf16.msra.mxu0 %v777
    %1024 = vmatprep.subr.bf16.mxu0 %v782
    %1025 = vmatpush1.bf16.msra.mxu0 %v781
    %1026 = vmatprep.subr.bf16.mxu0 %v786
    %1027 = vmatpush1.bf16.msra.mxu0 %v785
    %1028 = vmatprep.subr.bf16.mxu0 %v790
    %1029 = vmatpush1.bf16.msra.mxu0 %v789
    %1030 = vmatprep.mubr.bf16.mxu0 %v228
    %1031 = vmatmul.mubr.bf16.gmra.mrb[0].mxu0 %v227
    %v1032 = vpop.f32.mrb[0].mxu0
    %v1033 = vadd.f32 %v992, %v1032
    %v1034 = vpop.f32.mrb[0].mxu0
    %v1035 = vadd.f32 %v994, %v1034
    %v1036 = vpop.f32.mrb[0].mxu0
    %v1037 = vpop.f32.mrb[0].mxu0
    %1038 = vdwg.mxu0
    %1039 = vmatprep.subr.bf16.mxu0 %v794
    %1040 = vmatpush1.bf16.msra.mxu0 %v793
    %1041 = vmatprep.subr.bf16.mxu0 %v798
    %1042 = vmatpush1.bf16.msra.mxu0 %v797
    %1043 = vmatprep.subr.bf16.mxu0 %v802
    %1044 = vmatpush1.bf16.msra.mxu0 %v801
    %1045 = vmatprep.subr.bf16.mxu0 %v806
    %1046 = vmatpush1.bf16.msra.mxu0 %v805
    %1047 = vmatprep.subr.bf16.mxu0 0
    %1048 = vmatpush1.bf16.msra.mxu0 0
    %1049 = vmatprep.subr.bf16.mxu0 0
    %1050 = vmatpush1.bf16.msra.mxu0 0
    %1051 = vmatprep.subr.bf16.mxu0 0
    %1052 = vmatpush1.bf16.msra.mxu0 0
    %1053 = vmatprep.subr.bf16.mxu0 0
    %1054 = vmatpush1.bf16.msra.mxu0 0
    %1055 = vmatprep.subr.bf16.mxu0 0
    %1056 = vmatpush1.bf16.msra.mxu0 0
    %1057 = vmatprep.subr.bf16.mxu0 0
    %1058 = vmatpush1.bf16.msra.mxu0 0
    %1059 = vmatprep.subr.bf16.mxu0 0
    %1060 = vmatpush1.bf16.msra.mxu0 0
    %1061 = vmatprep.subr.bf16.mxu0 0
    %1062 = vmatpush1.bf16.msra.mxu0 0
    %1063 = vmatprep.subr.bf16.mxu0 0
    %1064 = vmatpush1.bf16.msra.mxu0 0
    %1065 = vmatprep.subr.bf16.mxu0 0
    %1066 = vmatpush1.bf16.msra.mxu0 0
    %1067 = vmatprep.subr.bf16.mxu0 0
    %1068 = vmatpush1.bf16.msra.mxu0 0
    %1069 = vmatprep.subr.bf16.mxu0 0
    %1070 = vmatpush1.bf16.msra.mxu0 0
    %1071 = vmatprep.mubr.bf16.mxu0 0
    %1072 = vmatmul.mubr.bf16.gmra.mrb[0].mxu0 %v955
    %v1073 = vpop.f32.mrb[0].mxu0
    %v1074 = vadd.f32 %v1033, %v1073
    %v1075 = vpop.f32.mrb[0].mxu0
    %v1076 = vadd.f32 %v1035, %v1075
    %v1077 = vpop.f32.mrb[0].mxu0
    %v1078 = vpop.f32.mrb[0].mxu0
    %1079 = vdwg.mxu0
    %1080 = vmatprep.subr.bf16.mxu0 %v668
    %1081 = vmatpush1.bf16.msra.mxu0 %v667
    %1082 = vmatprep.subr.bf16.mxu0 %v672
    %1083 = vmatpush1.bf16.msra.mxu0 %v671
    %1084 = vmatprep.subr.bf16.mxu0 %v676
    %1085 = vmatpush1.bf16.msra.mxu0 %v675
    %1086 = vmatprep.subr.bf16.mxu0 %v680
    %1087 = vmatpush1.bf16.msra.mxu0 %v679
    %1088 = vmatprep.subr.bf16.mxu0 %v684
    %1089 = vmatpush1.bf16.msra.mxu0 %v683
    %1090 = vmatprep.subr.bf16.mxu0 %v688
    %1091 = vmatpush1.bf16.msra.mxu0 %v687
    %1092 = vmatprep.subr.bf16.mxu0 %v692
    %1093 = vmatpush1.bf16.msra.mxu0 %v691
    %1094 = vmatprep.subr.bf16.mxu0 %v696
    %1095 = vmatpush1.bf16.msra.mxu0 %v695
    %1096 = vmatprep.subr.bf16.mxu0 %v700
    %1097 = vmatpush1.bf16.msra.mxu0 %v699
    %1098 = vmatprep.subr.bf16.mxu0 %v704
    %1099 = vmatpush1.bf16.msra.mxu0 %v703
    %1100 = vmatprep.subr.bf16.mxu0 %v708
    %1101 = vmatpush1.bf16.msra.mxu0 %v707
    %1102 = vmatprep.subr.bf16.mxu0 %v712
    %1103 = vmatpush1.bf16.msra.mxu0 %v711
    %1104 = vmatprep.subr.bf16.mxu0 %v716
    %1105 = vmatpush1.bf16.msra.mxu0 %v715
    %1106 = vmatprep.subr.bf16.mxu0 %v720
    %1107 = vmatpush1.bf16.msra.mxu0 %v719
    %1108 = vmatprep.subr.bf16.mxu0 %v724
    %1109 = vmatpush1.bf16.msra.mxu0 %v723
    %1110 = vmatprep.subr.bf16.mxu0 %v728
    %1111 = vmatpush1.bf16.msra.mxu0 %v727
    %1112 = vmatprep.mubr.bf16.mxu0 %v226
    %1113 = vmatmul.mubr.bf16.gmra.mrb[0].mxu0 %v212
    %v1114 = vpop.f32.mrb[0].mxu0
    %v1115 = vadd.f32 %v180, %v1114
    %v1116 = vpop.f32.mrb[0].mxu0
    %v1117 = vadd.f32 %v184, %v1116
    %v1118 = vpop.f32.mrb[0].mxu0
    %v1119 = vpop.f32.mrb[0].mxu0
    %1120 = vdwg.mxu0
    %1121 = vmatprep.subr.bf16.mxu0 %v732
    %1122 = vmatpush1.bf16.msra.mxu0 %v731
    %1123 = vmatprep.subr.bf16.mxu0 %v736
    %1124 = vmatpush1.bf16.msra.mxu0 %v735
    %1125 = vmatprep.subr.bf16.mxu0 %v740
    %1126 = vmatpush1.bf16.msra.mxu0 %v739
    %1127 = vmatprep.subr.bf16.mxu0 %v744
    %1128 = vmatpush1.bf16.msra.mxu0 %v743
    %1129 = vmatprep.subr.bf16.mxu0 %v748
    %1130 = vmatpush1.bf16.msra.mxu0 %v747
    %1131 = vmatprep.subr.bf16.mxu0 %v752
    %1132 = vmatpush1.bf16.msra.mxu0 %v751
    %1133 = vmatprep.subr.bf16.mxu0 %v756
    %1134 = vmatpush1.bf16.msra.mxu0 %v755
    %1135 = vmatprep.subr.bf16.mxu0 %v760
    %1136 = vmatpush1.bf16.msra.mxu0 %v759
    %1137 = vmatprep.subr.bf16.mxu0 %v764
    %1138 = vmatpush1.bf16.msra.mxu0 %v763
    %1139 = vmatprep.subr.bf16.mxu0 %v768
    %1140 = vmatpush1.bf16.msra.mxu0 %v767
    %1141 = vmatprep.subr.bf16.mxu0 %v772
    %1142 = vmatpush1.bf16.msra.mxu0 %v771
    %1143 = vmatprep.subr.bf16.mxu0 %v776
    %1144 = vmatpush1.bf16.msra.mxu0 %v775
    %1145 = vmatprep.subr.bf16.mxu0 %v780
    %1146 = vmatpush1.bf16.msra.mxu0 %v779
    %1147 = vmatprep.subr.bf16.mxu0 %v784
    %1148 = vmatpush1.bf16.msra.mxu0 %v783
    %1149 = vmatprep.subr.bf16.mxu0 %v788
    %1150 = vmatpush1.bf16.msra.mxu0 %v787
    %1151 = vmatprep.subr.bf16.mxu0 %v792
    %1152 = vmatpush1.bf16.msra.mxu0 %v791
    %1153 = vmatprep.mubr.bf16.mxu0 %v228
    %1154 = vmatmul.mubr.bf16.gmra.mrb[0].mxu0 %v227
    %v1155 = vpop.f32.mrb[0].mxu0
    %v1156 = vadd.f32 %v1115, %v1155
    %v1157 = vpop.f32.mrb[0].mxu0
    %v1158 = vadd.f32 %v1117, %v1157
    %v1159 = vpop.f32.mrb[0].mxu0
    %v1160 = vpop.f32.mrb[0].mxu0
    %1161 = vdwg.mxu0
    %1162 = vmatprep.subr.bf16.mxu0 %v796
    %1163 = vmatpush1.bf16.msra.mxu0 %v795
    %1164 = vmatprep.subr.bf16.mxu0 %v800
    %1165 = vmatpush1.bf16.msra.mxu0 %v799
    %1166 = vmatprep.subr.bf16.mxu0 %v804
    %1167 = vmatpush1.bf16.msra.mxu0 %v803
    %1168 = vmatprep.subr.bf16.mxu0 %v808
    %1169 = vmatpush1.bf16.msra.mxu0 %v807
    %1170 = vmatprep.subr.bf16.mxu0 0
    %1171 = vmatpush1.bf16.msra.mxu0 0
    %1172 = vmatprep.subr.bf16.mxu0 0
    %1173 = vmatpush1.bf16.msra.mxu0 0
    %1174 = vmatprep.subr.bf16.mxu0 0
    %1175 = vmatpush1.bf16.msra.mxu0 0
    %1176 = vmatprep.subr.bf16.mxu0 0
    %1177 = vmatpush1.bf16.msra.mxu0 0
    %1178 = vmatprep.subr.bf16.mxu0 0
    %1179 = vmatpush1.bf16.msra.mxu0 0
    %1180 = vmatprep.subr.bf16.mxu0 0
    %1181 = vmatpush1.bf16.msra.mxu0 0
    %1182 = vmatprep.subr.bf16.mxu0 0
    %1183 = vmatpush1.bf16.msra.mxu0 0
    %1184 = vmatprep.subr.bf16.mxu0 0
    %1185 = vmatpush1.bf16.msra.mxu0 0
    %1186 = vmatprep.subr.bf16.mxu0 0
    %1187 = vmatpush1.bf16.msra.mxu0 0
    %1188 = vmatprep.subr.bf16.mxu0 0
    %1189 = vmatpush1.bf16.msra.mxu0 0
    %1190 = vmatprep.subr.bf16.mxu0 0
    %1191 = vmatpush1.bf16.msra.mxu0 0
    %1192 = vmatprep.subr.bf16.mxu0 0
    %1193 = vmatpush1.bf16.msra.mxu0 0
    %1194 = vmatprep.mubr.bf16.mxu0 0
    %1195 = vmatmul.mubr.bf16.gmra.mrb[0].mxu0 %v955
    %v1196 = vpop.f32.mrb[0].mxu0
    %v1197 = vadd.f32 %v1156, %v1196
    %v1198 = vpop.f32.mrb[0].mxu0
    %v1199 = vadd.f32 %v1158, %v1198
    %v1200 = vpop.f32.mrb[0].mxu0
    %v1201 = vpop.f32.mrb[0].mxu0
    %1202 = vdwg.mxu0
    %v1203 = vmax.f32 %v1074, 0.0
    %v1204 = vmax.f32 %v1076, 0.0
    %v1205 = vmax.f32 %v1197, 0.0
    %v1206 = vmax.f32 %v1199, 0.0
    %v1207 = vpack.c.bf16 %v1203, %v1203
    %v1208 = vpack.c.bf16 %v1204, %v1204
    %v1209 = vpack.c.bf16 %v1205, %v1205
    %v1210 = vpack.c.bf16 %v1206, %v1206
    %v1211 = vld [vmem:[%s3] sm:$0xf]
    %v1212 = vld [vmem:[%s3 + $0x4] sm:$0xf]
    %v1213 = vld [vmem:[%s3 + $0x8] sm:$0xf]
    %v1214 = vld [vmem:[%s3 + $0xc] sm:$0xf]
    %v1215 = vld [vmem:[%s3 + $0x10] sm:$0xf]
    %v1216 = vld [vmem:[%s3 + $0x14] sm:$0xf]
    %v1217 = vld [vmem:[%s3 + $0x18] sm:$0xf]
    %v1218 = vld [vmem:[%s3 + $0x1c] sm:$0xf]
    %v1219 = vld [vmem:[%s3 + $0x20] sm:$0xf]
    %v1220 = vld [vmem:[%s3 + $0x24] sm:$0xf]
    %v1221 = vld [vmem:[%s3 + $0x28] sm:$0xf]
    %v1222 = vld [vmem:[%s3 + $0x2c] sm:$0xf]
    %v1223 = vld [vmem:[%s3 + $0x30] sm:$0xf]
    %v1224 = vld [vmem:[%s3 + $0x34] sm:$0xf]
    %v1225 = vld [vmem:[%s3 + $0x38] sm:$0xf]
    %v1226 = vld [vmem:[%s3 + $0x3c] sm:$0xf]
    %v1227 = vld [vmem:[%s3 + $0x40] sm:$0xf]
    %v1228 = vld [vmem:[%s3 + $0x44] sm:$0xf]
    %v1229 = vld [vmem:[%s3 + $0x48] sm:$0xf]
    %v1230 = vld [vmem:[%s3 + $0x4c] sm:$0xf]
    %v1231 = vld [vmem:[%s3 + $0x50] sm:$0xf]
    %v1232 = vld [vmem:[%s3 + $0x54] sm:$0xf]
    %v1233 = vld [vmem:[%s3 + $0x58] sm:$0xf]
    %v1234 = vld [vmem:[%s3 + $0x5c] sm:$0xf]
    %v1235 = vld [vmem:[%s3 + $0x60] sm:$0xf]
    %v1236 = vld [vmem:[%s3 + $0x64] sm:$0xf]
    %v1237 = vld [vmem:[%s3 + $0x68] sm:$0xf]
    %v1238 = vld [vmem:[%s3 + $0x6c] sm:$0xf]
    %v1239 = vld [vmem:[%s3 + $0x70] sm:$0xf]
    %v1240 = vld [vmem:[%s3 + $0x74] sm:$0xf]
    %v1241 = vld [vmem:[%s3 + $0x78] sm:$0xf]
    %v1242 = vld [vmem:[%s3 + $0x7c] sm:$0xf]
    %v1243 = vld [vmem:[%s3 + $0x80] sm:$0xf]
    %v1244 = vld [vmem:[%s3 + $0x84] sm:$0xf]
    %v1245 = vld [vmem:[%s3 + $0x88] sm:$0xf]
    %v1246 = vld [vmem:[%s3 + $0x8c] sm:$0xf]
    %v1247 = vld [vmem:[%s3 + $0x90] sm:$0xf]
    %v1248 = vld [vmem:[%s3 + $0x94] sm:$0xf]
    %v1249 = vld [vmem:[%s3 + $0x98] sm:$0xf]
    %v1250 = vld [vmem:[%s3 + $0x9c] sm:$0xf]
    %v1251 = vld [vmem:[%s3 + $0xa0] sm:$0xf]
    %v1252 = vld [vmem:[%s3 + $0xa4] sm:$0xf]
    %v1253 = vld [vmem:[%s3 + $0xa8] sm:$0xf]
    %v1254 = vld [vmem:[%s3 + $0xac] sm:$0xf]
    %v1255 = vld [vmem:[%s3 + $0xb0] sm:$0xf]
    %v1256 = vld [vmem:[%s3 + $0xb4] sm:$0xf]
    %v1257 = vld [vmem:[%s3 + $0xb8] sm:$0xf]
    %v1258 = vld [vmem:[%s3 + $0xbc] sm:$0xf]
    %v1259 = vld [vmem:[%s3 + $0xc0] sm:$0xf]
    %v1260 = vld [vmem:[%s3 + $0xc4] sm:$0xf]
    %v1261 = vld [vmem:[%s3 + $0xc8] sm:$0xf]
    %v1262 = vld [vmem:[%s3 + $0xcc] sm:$0xf]
    %v1263 = vld [vmem:[%s3 + $0xd0] sm:$0xf]
    %v1264 = vld [vmem:[%s3 + $0xd4] sm:$0xf]
    %v1265 = vld [vmem:[%s3 + $0xd8] sm:$0xf]
    %v1266 = vld [vmem:[%s3 + $0xdc] sm:$0xf]
    %v1267 = vld [vmem:[%s3 + $0xe0] sm:$0xf]
    %v1268 = vld [vmem:[%s3 + $0xe4] sm:$0xf]
    %v1269 = vld [vmem:[%s3 + $0xe8] sm:$0xf]
    %v1270 = vld [vmem:[%s3 + $0xec] sm:$0xf]
    %v1271 = vld [vmem:[%s3 + $0xf0] sm:$0xf]
    %v1272 = vld [vmem:[%s3 + $0xf4] sm:$0xf]
    %v1273 = vld [vmem:[%s3 + $0xf8] sm:$0xf]
    %v1274 = vld [vmem:[%s3 + $0xfc] sm:$0xf]
    %v1275 = vld [vmem:[%s4] sm:$0x1]
    %v1277 = vlaneseq
    %v1278 = vshrl.u32 %v1277, 7
    %v1279 = vsub.s32 0, %v1278
    %v1280 = vrot.slane %v1275, %v1279
    %v1346 = vunpack.c.l.b16 %v1211
    %v1347 = vunpack.c.l.b16 %v1212
    %v1348 = vunpack.c.l.b16 %v1213
    %v1349 = vunpack.c.l.b16 %v1214
    %v1350 = vunpack.c.l.b16 %v1215
    %v1351 = vunpack.c.l.b16 %v1216
    %v1352 = vunpack.c.l.b16 %v1217
    %v1353 = vunpack.c.l.b16 %v1218
    %v1354 = vunpack.c.l.b16 %v1219
    %v1355 = vunpack.c.l.b16 %v1220
    %v1356 = vunpack.c.l.b16 %v1221
    %v1357 = vunpack.c.l.b16 %v1222
    %v1358 = vunpack.c.l.b16 %v1223
    %v1359 = vunpack.c.l.b16 %v1224
    %v1360 = vunpack.c.l.b16 %v1225
    %v1361 = vunpack.c.l.b16 %v1226
    %v1362 = vunpack.c.l.b16 %v1227
    %v1363 = vunpack.c.l.b16 %v1228
    %v1364 = vunpack.c.l.b16 %v1229
    %v1365 = vunpack.c.l.b16 %v1230
    %v1366 = vunpack.c.l.b16 %v1231
    %v1367 = vunpack.c.l.b16 %v1232
    %v1368 = vunpack.c.l.b16 %v1233
    %v1369 = vunpack.c.l.b16 %v1234
    %v1370 = vunpack.c.l.b16 %v1235
    %v1371 = vunpack.c.l.b16 %v1236
    %v1372 = vunpack.c.l.b16 %v1237
    %v1373 = vunpack.c.l.b16 %v1238
    %v1374 = vunpack.c.l.b16 %v1239
    %v1375 = vunpack.c.l.b16 %v1240
    %v1376 = vunpack.c.l.b16 %v1241
    %v1377 = vunpack.c.l.b16 %v1242
    %v1378 = vunpack.c.l.b16 %v1243
    %v1379 = vunpack.c.l.b16 %v1244
    %v1380 = vunpack.c.l.b16 %v1245
    %v1381 = vunpack.c.l.b16 %v1246
    %v1382 = vunpack.c.l.b16 %v1247
    %v1383 = vunpack.c.l.b16 %v1248
    %v1384 = vunpack.c.l.b16 %v1249
    %v1385 = vunpack.c.l.b16 %v1250
    %v1386 = vunpack.c.l.b16 %v1251
    %v1387 = vunpack.c.l.b16 %v1252
    %v1388 = vunpack.c.l.b16 %v1253
    %v1389 = vunpack.c.l.b16 %v1254
    %v1390 = vunpack.c.l.b16 %v1255
    %v1391 = vunpack.c.l.b16 %v1256
    %v1392 = vunpack.c.l.b16 %v1257
    %v1393 = vunpack.c.l.b16 %v1258
    %v1394 = vunpack.c.l.b16 %v1259
    %v1395 = vunpack.c.l.b16 %v1260
    %v1396 = vunpack.c.l.b16 %v1261
    %v1397 = vunpack.c.l.b16 %v1262
    %v1398 = vunpack.c.l.b16 %v1263
    %v1399 = vunpack.c.l.b16 %v1264
    %v1400 = vunpack.c.l.b16 %v1265
    %v1401 = vunpack.c.l.b16 %v1266
    %v1402 = vunpack.c.l.b16 %v1267
    %v1403 = vunpack.c.l.b16 %v1268
    %v1404 = vunpack.c.l.b16 %v1269
    %v1405 = vunpack.c.l.b16 %v1270
    %v1406 = vunpack.c.l.b16 %v1271
    %v1407 = vunpack.c.l.b16 %v1272
    %v1408 = vunpack.c.l.b16 %v1273
    %v1409 = vunpack.c.l.b16 %v1274
    %v1410 = vpack.c.b16 %v1347, %v1346
    %v1411 = vpack.c.b16 %v1349, %v1348
    %v1412 = vpack.c.b16 %v1351, %v1350
    %v1413 = vpack.c.b16 %v1353, %v1352
    %v1414 = vpack.c.b16 %v1355, %v1354
    %v1415 = vpack.c.b16 %v1357, %v1356
    %v1416 = vpack.c.b16 %v1359, %v1358
    %v1417 = vpack.c.b16 %v1361, %v1360
    %v1418 = vpack.c.b16 %v1363, %v1362
    %v1419 = vpack.c.b16 %v1365, %v1364
    %v1420 = vpack.c.b16 %v1367, %v1366
    %v1421 = vpack.c.b16 %v1369, %v1368
    %v1422 = vpack.c.b16 %v1371, %v1370
    %v1423 = vpack.c.b16 %v1373, %v1372
    %v1424 = vpack.c.b16 %v1375, %v1374
    %v1425 = vpack.c.b16 %v1377, %v1376
    %v1426 = vpack.c.b16 %v1379, %v1378
    %v1427 = vpack.c.b16 %v1381, %v1380
    %v1428 = vpack.c.b16 %v1383, %v1382
    %v1429 = vpack.c.b16 %v1385, %v1384
    %v1430 = vpack.c.b16 %v1387, %v1386
    %v1431 = vpack.c.b16 %v1389, %v1388
    %v1432 = vpack.c.b16 %v1391, %v1390
    %v1433 = vpack.c.b16 %v1393, %v1392
    %v1434 = vpack.c.b16 %v1395, %v1394
    %v1435 = vpack.c.b16 %v1397, %v1396
    %v1436 = vpack.c.b16 %v1399, %v1398
    %v1437 = vpack.c.b16 %v1401, %v1400
    %v1438 = vpack.c.b16 %v1403, %v1402
    %v1439 = vpack.c.b16 %v1405, %v1404
    %v1440 = vpack.c.b16 %v1407, %v1406
    %v1441 = vpack.c.b16 %v1409, %v1408
    %1474 = vmatprep.subr.bf16.mxu0 0
    %1475 = vmatpush1.bf16.msra.mxu0 %v1410
    %1476 = vmatprep.subr.bf16.mxu0 0
    %1477 = vmatpush1.bf16.msra.mxu0 %v1411
    %1478 = vmatprep.subr.bf16.mxu0 0
    %1479 = vmatpush1.bf16.msra.mxu0 %v1412
    %1480 = vmatprep.subr.bf16.mxu0 0
    %1481 = vmatpush1.bf16.msra.mxu0 %v1413
    %1482 = vmatprep.subr.bf16.mxu0 0
    %1483 = vmatpush1.bf16.msra.mxu0 %v1414
    %1484 = vmatprep.subr.bf16.mxu0 0
    %1485 = vmatpush1.bf16.msra.mxu0 %v1415
    %1486 = vmatprep.subr.bf16.mxu0 0
    %1487 = vmatpush1.bf16.msra.mxu0 %v1416
    %1488 = vmatprep.subr.bf16.mxu0 0
    %1489 = vmatpush1.bf16.msra.mxu0 %v1417
    %1490 = vmatprep.subr.bf16.mxu0 0
    %1491 = vmatpush1.bf16.msra.mxu0 %v1418
    %1492 = vmatprep.subr.bf16.mxu0 0
    %1493 = vmatpush1.bf16.msra.mxu0 %v1419
    %1494 = vmatprep.subr.bf16.mxu0 0
    %1495 = vmatpush1.bf16.msra.mxu0 %v1420
    %1496 = vmatprep.subr.bf16.mxu0 0
    %1497 = vmatpush1.bf16.msra.mxu0 %v1421
    %1498 = vmatprep.subr.bf16.mxu0 0
    %1499 = vmatpush1.bf16.msra.mxu0 %v1422
    %1500 = vmatprep.subr.bf16.mxu0 0
    %1501 = vmatpush1.bf16.msra.mxu0 %v1423
    %1502 = vmatprep.subr.bf16.mxu0 0
    %1503 = vmatpush1.bf16.msra.mxu0 %v1424
    %1504 = vmatprep.subr.bf16.mxu0 0
    %1505 = vmatpush1.bf16.msra.mxu0 %v1425
    %1506 = vmatprep.mubr.bf16.mxu0 %v1208
    %1507 = vmatmul.mubr.bf16.gmra.mrb[0].mxu0 %v1207
    %v1508 = vpop.f32.mrb[0].mxu0
    %v1509 = vadd.f32 %v1280, %v1508
    %v1510 = vpop.f32.mrb[0].mxu0
    %v1511 = vpop.f32.mrb[0].mxu0
    %v1512 = vpop.f32.mrb[0].mxu0
    %1513 = vdwg.mxu0
    %1514 = vmatprep.subr.bf16.mxu0 0
    %1515 = vmatpush1.bf16.msra.mxu0 %v1426
    %1516 = vmatprep.subr.bf16.mxu0 0
    %1517 = vmatpush1.bf16.msra.mxu0 %v1427
    %1518 = vmatprep.subr.bf16.mxu0 0
    %1519 = vmatpush1.bf16.msra.mxu0 %v1428
    %1520 = vmatprep.subr.bf16.mxu0 0
    %1521 = vmatpush1.bf16.msra.mxu0 %v1429
    %1522 = vmatprep.subr.bf16.mxu0 0
    %1523 = vmatpush1.bf16.msra.mxu0 %v1430
    %1524 = vmatprep.subr.bf16.mxu0 0
    %1525 = vmatpush1.bf16.msra.mxu0 %v1431
    %1526 = vmatprep.subr.bf16.mxu0 0
    %1527 = vmatpush1.bf16.msra.mxu0 %v1432
    %1528 = vmatprep.subr.bf16.mxu0 0
    %1529 = vmatpush1.bf16.msra.mxu0 %v1433
    %1530 = vmatprep.subr.bf16.mxu0 0
    %1531 = vmatpush1.bf16.msra.mxu0 %v1434
    %1532 = vmatprep.subr.bf16.mxu0 0
    %1533 = vmatpush1.bf16.msra.mxu0 %v1435
    %1534 = vmatprep.subr.bf16.mxu0 0
    %1535 = vmatpush1.bf16.msra.mxu0 %v1436
    %1536 = vmatprep.subr.bf16.mxu0 0
    %1537 = vmatpush1.bf16.msra.mxu0 %v1437
    %1538 = vmatprep.subr.bf16.mxu0 0
    %1539 = vmatpush1.bf16.msra.mxu0 %v1438
    %1540 = vmatprep.subr.bf16.mxu0 0
    %1541 = vmatpush1.bf16.msra.mxu0 %v1439
    %1542 = vmatprep.subr.bf16.mxu0 0
    %1543 = vmatpush1.bf16.msra.mxu0 %v1440
    %1544 = vmatprep.subr.bf16.mxu0 0
    %1545 = vmatpush1.bf16.msra.mxu0 %v1441
    %1546 = vmatprep.mubr.bf16.mxu0 %v1210
    %1547 = vmatmul.mubr.bf16.gmra.mrb[0].mxu0 %v1209
    %v1548 = vpop.f32.mrb[0].mxu0
    %v1549 = vadd.f32 %v1509, %v1548
    %v1550 = vpop.f32.mrb[0].mxu0
    %v1551 = vpop.f32.mrb[0].mxu0
    %v1552 = vpop.f32.mrb[0].mxu0
    %1553 = vdwg.mxu0
    %vm1554 = vcmask 41984
    %1555 = vst.msk [vmem:[#allocation2] sm:$0x3] %vm1554, %v1549
    // Predicated region
    $region22: #{dqn_conv_forward.7} parent=1 // pred_check
      _
    $region23: #{dqn_conv_forward.7} parent=1 // pred_check_branch
      %1557 = sbr.rel (0) target = $region25
    $region24: #{dqn_conv_forward.7} parent=1 // pred_region
      %s1559 = ssub.s32 32, 32
      %1560 = vsyncadd [#allocation3], %s1559
      %s1562 = sshll.u32 [#allocation2], 4
      %s1563 = int_to_ptr.vmem [resolvable:$true] %s1562
      %1565 = dma.vmem_to_hbm [thread:$0]  %s1563, 32, %s5, [#allocation3]
    $region25: #{dqn_conv_forward.7} parent=1 // pred_fallthru
      _
    // Predicated region
    $region26: #{dqn_conv_forward.7} parent=1 // pred_check
      _
    $region27: #{dqn_conv_forward.7} parent=1 // pred_check_branch
      %1567 = sbr.rel (0) target = $region29
    $region28: #{dqn_conv_forward.7} parent=1 // pred_region
      %1568 = dma.done [#allocation3], 32
    $region29: #{dqn_conv_forward.7} parent=1 // pred_fallthru
      _
    %1569 = vsyncpa [#allocation3], 1

</llo_original>
